<compile_context>
chip_gen: v6e
topology: v6e:2x2x1
jax: 0.10.0
libtpu: 0.0.40
codegen_flags: <defaults>
</compile_context>

<pallas_src>
import functools

import numpy as np
import jax
import jax.numpy as jnp
from jax.experimental import pallas as pl
from jax.experimental.pallas import tpu as pltpu


def _next_pow2(n):
    return 1 << (n - 1).bit_length()


# ----------------------------------------------------------------------------
# Single fused kernel (gridless): standardize -> bitonic sort -> (folded)
# feature matmul -> pool_encoder MLP -> pool over N -> encoder3 head -> tanh.
# ----------------------------------------------------------------------------
def _fused_kernel(x_ref, fw1_ref, b1_ref, w2_ref, b2_ref,
                  w31_ref, b31_ref, w32_ref, b32_ref,
                  out_ref, *, B, N, D, LANES, margin):
    R = B * N
    nh = w2_ref.shape[0]

    # ---- per list element: column-wise standardization (unbiased std) -----
    # Kept as values: no scratch store/reload.  (N == 1 -> div by zero, exactly
    # like the torch reference.)  Zero-padded lanes standardize to 0 and are
    # overwritten with +inf below, so they never perturb the real columns.
    parts = []
    for b in range(B):                          # B is tiny -> static unroll
        v = x_ref[b * N:(b + 1) * N, :]         # (N, LANES)
        mean = jnp.mean(v, axis=0, keepdims=True)
        c = v - mean
        var = jnp.sum(c * c, axis=0, keepdims=True) / (N - 1.0)
        parts.append(c / (jnp.sqrt(var) + 1e-10))
    xs = jnp.concatenate(parts, axis=0)         # (R, LANES), 8-row aligned concat

    # ---- row-wise ascending bitonic sort over the lane axis ---------------
    # partner(i) = i XOR j  ==  i+j (bit j clear) / i-j (bit j set), realized as
    # two XLU lane rotations + a bit-test select.  Pad lanes hold +inf so the
    # first D lanes of the result are exactly sorted(x).
    # (For large R, compute the masks once at (1, LANES) per stage; full-shape
    #  iota is used here for lowering robustness at toy sizes.)
    lane = jax.lax.broadcasted_iota(jnp.int32, (R, LANES), 1)
    in_data = lane < D
    x = jnp.where(in_data, xs, jnp.inf)

    k = 2
    while k <= LANES:                           # bitonic merge sizes
        sk = k.bit_length() - 1
        j = k // 2
        while j >= 1:                           # compare-exchange distances
            sj = j.bit_length() - 1
            bit_j = (lane >> sj) & 1
            bit_k = (lane >> sk) & 1
            upper = bit_j == 1                  # lanes whose partner is i - j
            take_min = bit_j == bit_k
            partner = jnp.where(upper,
                                pltpu.roll(x, j, axis=1),           # x[i - j]
                                pltpu.roll(x, LANES - j, axis=1))    # x[i + j]
            x = jnp.where(take_min,
                          jnp.minimum(x, partner),
                          jnp.maximum(x, partner))
            j //= 2
        k *= 2
    sorted_x = jnp.where(in_data, x, 0.0)       # zero the +inf pad lanes (MXU-safe)

    # ---- [min | max | adaptive_avg_pool] + pool_encoder MLP (batched) -----
    # fmat @ w1 is folded host-side into fw1 (zero rows for the pad lanes), so
    # the lane-dense sorted tile feeds the MXU directly.
    h = jnp.dot(sorted_x, fw1_ref[...],
                preferred_element_type=jnp.float32) + b1_ref[...]
    h = jnp.maximum(h, 0.0)
    h = jnp.dot(h, w2_ref[...],
                preferred_element_type=jnp.float32) + b2_ref[...]     # (R, nh)

    # ---- max/min/mean pooling over N per list element (values only) -------
    def assemble(rows):                         # list of B (1, nh) rows -> (B, nh)
        rid = jax.lax.broadcasted_iota(jnp.int32, (B, nh), 0)
        out = jnp.broadcast_to(rows[0], (B, nh))
        for b in range(1, B):
            out = jnp.where(rid == b, jnp.broadcast_to(rows[b], (B, nh)), out)
        return out

    maxs, mins, means = [], [], []
    for b in range(B):
        hb = h[b * N:(b + 1) * N, :]            # (N, nh) static, 8-row aligned
        maxs.append(jnp.max(hb, axis=0, keepdims=True))
        mins.append(jnp.min(hb, axis=0, keepdims=True))
        means.append(jnp.mean(hb, axis=0, keepdims=True))
    hmax, hmin, hmean = assemble(maxs), assemble(mins), assemble(means)

    # ---- encoder3 head: hh = [max|min|mean]; hh @ w31 is computed as the sum
    # of three row-block matmuls so the concatenated hh never has to be built.
    g = (jnp.dot(hmax, w31_ref[0:nh, :], preferred_element_type=jnp.float32)
         + jnp.dot(hmin, w31_ref[nh:2 * nh, :], preferred_element_type=jnp.float32)
         + jnp.dot(hmean, w31_ref[2 * nh:3 * nh, :], preferred_element_type=jnp.float32)
         + b31_ref[...])
    g = jnp.maximum(g, 0.0)
    y = jnp.dot(g, w32_ref[...], preferred_element_type=jnp.float32) + b32_ref[...]
    out_ref[...] = jnp.tanh(y) * margin         # single (B, 2) store


def adaptive_pool_matrix(L, O):
    """P such that (sorted @ P)[:, i] == F.adaptive_avg_pool1d over last dim."""
    P = np.zeros((L, O), dtype=np.float32)
    for i in range(O):
        s = (i * L) // O
        e = -(-((i + 1) * L) // O)              # ceil((i+1)*L/O)
        P[s:e, i] = 1.0 / (e - s)
    return P


def new_forward(scores, params, margin):
    """scores: (B, N, D) float32.  Returns (B, 2)."""
    B, N, D = scores.shape
    fmat, w1, b1, w2, b2, w31, b31, w32, b32 = params
    nh = w1.shape[0]
    nh3 = w31.shape[1]

    LANES = max(128, _next_pow2(D))             # sort runs at native lane width
    R = B * N

    # Host-side prep (cheap XLA ops): flatten to rows, zero-pad the lane axis,
    # fold the feature matrix into the first pool_encoder weight (zero pad rows).
    x2d = scores.reshape(R, D)
    xp = jnp.pad(x2d, ((0, 0), (0, LANES - D)))
    fw1 = jnp.pad(fmat @ w1, ((0, LANES - D), (0, 0)))       # (LANES, nh)

    lg = int(np.log2(LANES))
    n_stages = lg * (lg + 1) // 2
    flops = (8 * R * LANES * n_stages                        # sort (VPU/XLU ops)
             + 2 * R * LANES * nh                            # feature+w1 matmul
             + 2 * R * nh * nh                               # pool_encoder layer 2
             + 2 * B * (3 * nh * nh3 + nh3 * 2))             # encoder3 head
    bytes_accessed = 4 * (R * LANES + LANES * nh + nh * nh + 2 * nh
                          + 3 * nh * nh3 + nh3 + nh3 * 2 + 2 + B * 2)

    kernel = functools.partial(_fused_kernel, B=B, N=N, D=D, LANES=LANES,
                               margin=margin)
    # TODO(synk): at production B*N, tile the rows with a "parallel" grid axis,
    # pipelined BlockSpecs and pltpu.CompilerParams(vmem_limit_bytes=...); gridless
    # single-shot is the right call at these toy shapes.
    return pl.pallas_call(
        kernel,
        out_shape=jax.ShapeDtypeStruct((B, 2), jnp.float32),
        cost_estimate=pl.CostEstimate(
            flops=flops,
            transcendentals=B * LANES + 2 * B,               # sqrt + tanh
            bytes_accessed=bytes_accessed),
    )(xp, fw1, b1, w2, b2, w31, b31, w32, b32)


def reference_forward(scores, params, margin):
    """Pure-JAX reference mirroring the PyTorch module."""
    fmat, w1, b1, w2, b2, w31, b31, w32, b32 = params
    outs = []
    for bi in range(scores.shape[0]):
        v = scores[bi]
        m = jnp.mean(v, axis=0, keepdims=True)
        s = jnp.std(v, axis=0, keepdims=True, ddof=1)
        xn = (v - m) / (s + 1e-10)
        srt = jnp.sort(xn, axis=-1)
        feat = srt @ fmat                       # min | max | adaptive pool
        h = jax.nn.relu(feat @ w1 + b1)
        h = h @ w2 + b2
        outs.append(jnp.concatenate([h.max(0), h.min(0), h.mean(0)]))
    hh = jnp.stack(outs, axis=0)
    hh = jax.nn.relu(hh @ w31 + b31)
    hh = hh @ w32 + b32
    return jnp.tanh(hh) * margin


def init_params(key, D, nh, nh3):
    """Deterministic Linear-style init; weights stored as (in, out)."""
    def linear(k, fin, fout):
        k1, k2 = jax.random.split(k)
        lim = 1.0 / np.sqrt(fin)
        w = jax.random.uniform(k1, (fin, fout), jnp.float32, -lim, lim)
        b = jax.random.uniform(k2, (1, fout), jnp.float32, -lim, lim)
        return w, b

    fmat = np.zeros((D, nh), np.float32)
    fmat[0, 0] = 1.0            # sorted[:, 0]  (row min)
    fmat[D - 1, 1] = 1.0        # sorted[:, -1] (row max)
    fmat[:, 2:] = adaptive_pool_matrix(D, nh - 2)
    fmat = jnp.asarray(fmat)

    k1, k2, k3, k4 = jax.random.split(key, 4)
    w1, b1 = linear(k1, nh, nh)             # pool_encoder MLP layer 1
    w2, b2 = linear(k2, nh, nh)             # pool_encoder MLP layer 2
    w31, b31 = linear(k3, 3 * nh, nh3)      # encoder3 layer 1
    w32, b32 = linear(k4, nh3, 2)           # encoder3 layer 2
    return (fmat, w1, b1, w2, b2, w31, b31, w32, b32)


if __name__ == "__main__":
    # small shapes consistent with the module:
    #   B = 2 list elements in data_batch['score'], each a (N=8, D=16) score matrix
    #   nh = 32, nh3 = 32, nlayers = 3, nlayers3 = 2, margin = 1.0
    B, N, D = 2, 8, 16
    nh, nh3 = 32, 32
    margin = 1.0

    key = jax.random.PRNGKey(0)
    kx, kp = jax.random.split(key)
    scores = jax.random.normal(kx, (B, N, D), jnp.float32)
    params = init_params(kp, D, nh, nh3)

    out = jax.block_until_ready(new_forward(scores, params, margin))
    ref = jax.block_until_ready(reference_forward(scores, params, margin))

    assert out.shape == (B, 2)
    assert np.allclose(np.asarray(out), np.asarray(ref), atol=1e-2, rtol=1e-2)

    print("KERNEL_OK")
</pallas_src>

<mosaic_0001>
module attributes {stable_mosaic.version = 11 : i64} {
  func.func @_fused_kernel(%arg0: memref<16x128xf32, #tpu.memory_space<vmem>>, %arg1: memref<128x32xf32, #tpu.memory_space<vmem>>, %arg2: memref<1x32xf32, #tpu.memory_space<vmem>>, %arg3: memref<32x32xf32, #tpu.memory_space<vmem>>, %arg4: memref<1x32xf32, #tpu.memory_space<vmem>>, %arg5: memref<96x32xf32, #tpu.memory_space<vmem>>, %arg6: memref<1x32xf32, #tpu.memory_space<vmem>>, %arg7: memref<32x2xf32, #tpu.memory_space<vmem>>, %arg8: memref<1x2xf32, #tpu.memory_space<vmem>>, %arg9: memref<2x2xf32, #tpu.memory_space<vmem>>) attributes {dimension_semantics = [], scalar_prefetch = 0 : i64, scratch_operands = 0 : i64, tpu.core_type = #tpu.core_type<tc>} {
    %c0 = arith.constant 0 : index
    %c0_0 = arith.constant 0 : index
    %0 = vector.load %arg0[%c0, %c0_0] : memref<16x128xf32, #tpu.memory_space<vmem>>, vector<8x128xf32>
    %cst = arith.constant dense<0.000000e+00> : vector<128xf32>
    %1 = vector.multi_reduction <add>, %0, %cst [0] : vector<8x128xf32> to vector<128xf32>
    %2 = vector.shape_cast %1 : vector<128xf32> to vector<1x128xf32>
    %cst_1 = arith.constant 8.000000e+00 : f32
    %3 = vector.broadcast %cst_1 : f32 to vector<1x128xf32>
    %4 = arith.divf %2, %3 : vector<1x128xf32>
    %5 = vector.broadcast %4 : vector<1x128xf32> to vector<8x128xf32>
    %6 = arith.subf %0, %5 : vector<8x128xf32>
    %7 = arith.mulf %6, %6 : vector<8x128xf32>
    %cst_2 = arith.constant dense<0.000000e+00> : vector<128xf32>
    %8 = vector.multi_reduction <add>, %7, %cst_2 [0] : vector<8x128xf32> to vector<128xf32>
    %9 = vector.shape_cast %8 : vector<128xf32> to vector<1x128xf32>
    %cst_3 = arith.constant 7.000000e+00 : f32
    %10 = vector.broadcast %cst_3 : f32 to vector<1x128xf32>
    %11 = arith.divf %9, %10 : vector<1x128xf32>
    %12 = math.sqrt %11 : vector<1x128xf32>
    %cst_4 = arith.constant 1.000000e-10 : f32
    %13 = vector.broadcast %cst_4 : f32 to vector<1x128xf32>
    %14 = arith.addf %12, %13 : vector<1x128xf32>
    %15 = vector.broadcast %14 : vector<1x128xf32> to vector<8x128xf32>
    %16 = arith.divf %6, %15 : vector<8x128xf32>
    %c8 = arith.constant 8 : index
    %c0_5 = arith.constant 0 : index
    %17 = vector.load %arg0[%c8, %c0_5] : memref<16x128xf32, #tpu.memory_space<vmem>>, vector<8x128xf32>
    %cst_6 = arith.constant dense<0.000000e+00> : vector<128xf32>
    %18 = vector.multi_reduction <add>, %17, %cst_6 [0] : vector<8x128xf32> to vector<128xf32>
    %19 = vector.shape_cast %18 : vector<128xf32> to vector<1x128xf32>
    %cst_7 = arith.constant 8.000000e+00 : f32
    %20 = vector.broadcast %cst_7 : f32 to vector<1x128xf32>
    %21 = arith.divf %19, %20 : vector<1x128xf32>
    %22 = vector.broadcast %21 : vector<1x128xf32> to vector<8x128xf32>
    %23 = arith.subf %17, %22 : vector<8x128xf32>
    %24 = arith.mulf %23, %23 : vector<8x128xf32>
    %cst_8 = arith.constant dense<0.000000e+00> : vector<128xf32>
    %25 = vector.multi_reduction <add>, %24, %cst_8 [0] : vector<8x128xf32> to vector<128xf32>
    %26 = vector.shape_cast %25 : vector<128xf32> to vector<1x128xf32>
    %cst_9 = arith.constant 7.000000e+00 : f32
    %27 = vector.broadcast %cst_9 : f32 to vector<1x128xf32>
    %28 = arith.divf %26, %27 : vector<1x128xf32>
    %29 = math.sqrt %28 : vector<1x128xf32>
    %cst_10 = arith.constant 1.000000e-10 : f32
    %30 = vector.broadcast %cst_10 : f32 to vector<1x128xf32>
    %31 = arith.addf %29, %30 : vector<1x128xf32>
    %32 = vector.broadcast %31 : vector<1x128xf32> to vector<8x128xf32>
    %33 = arith.divf %23, %32 : vector<8x128xf32>
    %34 = tpu.concatenate %16, %33 in 0 : vector<8x128xf32>, vector<8x128xf32> -> vector<16x128xf32>
    %35 = tpu.iota {dimensions = array<i32: 1>} : vector<16x128xi32>
    %c16_i32 = arith.constant 16 : i32
    %36 = vector.broadcast %c16_i32 : i32 to vector<16x128xi32>
    %37 = arith.cmpi slt, %35, %36 : vector<16x128xi32>
    %cst_11 = arith.constant 0x7F800000 : f32
    %38 = vector.broadcast %cst_11 : f32 to vector<16x128xf32>
    %39 = arith.select %37, %34, %38 : vector<16x128xi1>, vector<16x128xf32>
    %c0_i32 = arith.constant 0 : i32
    %40 = vector.broadcast %c0_i32 : i32 to vector<16x128xi32>
    %41 = arith.shrsi %35, %40 : vector<16x128xi32>
    %c1_i32 = arith.constant 1 : i32
    %42 = vector.broadcast %c1_i32 : i32 to vector<16x128xi32>
    %43 = arith.andi %41, %42 : vector<16x128xi32>
    %c1_i32_12 = arith.constant 1 : i32
    %44 = vector.broadcast %c1_i32_12 : i32 to vector<16x128xi32>
    %45 = arith.shrsi %35, %44 : vector<16x128xi32>
    %c1_i32_13 = arith.constant 1 : i32
    %46 = vector.broadcast %c1_i32_13 : i32 to vector<16x128xi32>
    %47 = arith.andi %45, %46 : vector<16x128xi32>
    %c1_i32_14 = arith.constant 1 : i32
    %48 = vector.broadcast %c1_i32_14 : i32 to vector<16x128xi32>
    %49 = arith.cmpi eq, %43, %48 : vector<16x128xi32>
    %50 = arith.cmpi eq, %43, %47 : vector<16x128xi32>
    %c1_i32_15 = arith.constant 1 : i32
    %51 = tpu.dynamic_rotate %39 by %c1_i32_15 dim 1 : vector<16x128xf32>, i32 -> vector<16x128xf32>
    %c127_i32 = arith.constant 127 : i32
    %52 = tpu.dynamic_rotate %39 by %c127_i32 dim 1 : vector<16x128xf32>, i32 -> vector<16x128xf32>
    %53 = arith.select %49, %51, %52 : vector<16x128xi1>, vector<16x128xf32>
    %54 = arith.minimumf %39, %53 : vector<16x128xf32>
    %55 = arith.maximumf %39, %53 : vector<16x128xf32>
    %56 = arith.select %50, %54, %55 : vector<16x128xi1>, vector<16x128xf32>
    %c1_i32_16 = arith.constant 1 : i32
    %57 = vector.broadcast %c1_i32_16 : i32 to vector<16x128xi32>
    %58 = arith.shrsi %35, %57 : vector<16x128xi32>
    %c1_i32_17 = arith.constant 1 : i32
    %59 = vector.broadcast %c1_i32_17 : i32 to vector<16x128xi32>
    %60 = arith.andi %58, %59 : vector<16x128xi32>
    %c2_i32 = arith.constant 2 : i32
    %61 = vector.broadcast %c2_i32 : i32 to vector<16x128xi32>
    %62 = arith.shrsi %35, %61 : vector<16x128xi32>
    %c1_i32_18 = arith.constant 1 : i32
    %63 = vector.broadcast %c1_i32_18 : i32 to vector<16x128xi32>
    %64 = arith.andi %62, %63 : vector<16x128xi32>
    %c1_i32_19 = arith.constant 1 : i32
    %65 = vector.broadcast %c1_i32_19 : i32 to vector<16x128xi32>
    %66 = arith.cmpi eq, %60, %65 : vector<16x128xi32>
    %67 = arith.cmpi eq, %60, %64 : vector<16x128xi32>
    %c2_i32_20 = arith.constant 2 : i32
    %68 = tpu.dynamic_rotate %56 by %c2_i32_20 dim 1 : vector<16x128xf32>, i32 -> vector<16x128xf32>
    %c126_i32 = arith.constant 126 : i32
    %69 = tpu.dynamic_rotate %56 by %c126_i32 dim 1 : vector<16x128xf32>, i32 -> vector<16x128xf32>
    %70 = arith.select %66, %68, %69 : vector<16x128xi1>, vector<16x128xf32>
    %71 = arith.minimumf %56, %70 : vector<16x128xf32>
    %72 = arith.maximumf %56, %70 : vector<16x128xf32>
    %73 = arith.select %67, %71, %72 : vector<16x128xi1>, vector<16x128xf32>
    %c0_i32_21 = arith.constant 0 : i32
    %74 = vector.broadcast %c0_i32_21 : i32 to vector<16x128xi32>
    %75 = arith.shrsi %35, %74 : vector<16x128xi32>
    %c1_i32_22 = arith.constant 1 : i32
    %76 = vector.broadcast %c1_i32_22 : i32 to vector<16x128xi32>
    %77 = arith.andi %75, %76 : vector<16x128xi32>
    %c2_i32_23 = arith.constant 2 : i32
    %78 = vector.broadcast %c2_i32_23 : i32 to vector<16x128xi32>
    %79 = arith.shrsi %35, %78 : vector<16x128xi32>
    %c1_i32_24 = arith.constant 1 : i32
    %80 = vector.broadcast %c1_i32_24 : i32 to vector<16x128xi32>
    %81 = arith.andi %79, %80 : vector<16x128xi32>
    %c1_i32_25 = arith.constant 1 : i32
    %82 = vector.broadcast %c1_i32_25 : i32 to vector<16x128xi32>
    %83 = arith.cmpi eq, %77, %82 : vector<16x128xi32>
    %84 = arith.cmpi eq, %77, %81 : vector<16x128xi32>
    %c1_i32_26 = arith.constant 1 : i32
    %85 = tpu.dynamic_rotate %73 by %c1_i32_26 dim 1 : vector<16x128xf32>, i32 -> vector<16x128xf32>
    %c127_i32_27 = arith.constant 127 : i32
    %86 = tpu.dynamic_rotate %73 by %c127_i32_27 dim 1 : vector<16x128xf32>, i32 -> vector<16x128xf32>
    %87 = arith.select %83, %85, %86 : vector<16x128xi1>, vector<16x128xf32>
    %88 = arith.minimumf %73, %87 : vector<16x128xf32>
    %89 = arith.maximumf %73, %87 : vector<16x128xf32>
    %90 = arith.select %84, %88, %89 : vector<16x128xi1>, vector<16x128xf32>
    %c2_i32_28 = arith.constant 2 : i32
    %91 = vector.broadcast %c2_i32_28 : i32 to vector<16x128xi32>
    %92 = arith.shrsi %35, %91 : vector<16x128xi32>
    %c1_i32_29 = arith.constant 1 : i32
    %93 = vector.broadcast %c1_i32_29 : i32 to vector<16x128xi32>
    %94 = arith.andi %92, %93 : vector<16x128xi32>
    %c3_i32 = arith.constant 3 : i32
    %95 = vector.broadcast %c3_i32 : i32 to vector<16x128xi32>
    %96 = arith.shrsi %35, %95 : vector<16x128xi32>
    %c1_i32_30 = arith.constant 1 : i32
    %97 = vector.broadcast %c1_i32_30 : i32 to vector<16x128xi32>
    %98 = arith.andi %96, %97 : vector<16x128xi32>
    %c1_i32_31 = arith.constant 1 : i32
    %99 = vector.broadcast %c1_i32_31 : i32 to vector<16x128xi32>
    %100 = arith.cmpi eq, %94, %99 : vector<16x128xi32>
    %101 = arith.cmpi eq, %94, %98 : vector<16x128xi32>
    %c4_i32 = arith.constant 4 : i32
    %102 = tpu.dynamic_rotate %90 by %c4_i32 dim 1 : vector<16x128xf32>, i32 -> vector<16x128xf32>
    %c124_i32 = arith.constant 124 : i32
    %103 = tpu.dynamic_rotate %90 by %c124_i32 dim 1 : vector<16x128xf32>, i32 -> vector<16x128xf32>
    %104 = arith.select %100, %102, %103 : vector<16x128xi1>, vector<16x128xf32>
    %105 = arith.minimumf %90, %104 : vector<16x128xf32>
    %106 = arith.maximumf %90, %104 : vector<16x128xf32>
    %107 = arith.select %101, %105, %106 : vector<16x128xi1>, vector<16x128xf32>
    %c1_i32_32 = arith.constant 1 : i32
    %108 = vector.broadcast %c1_i32_32 : i32 to vector<16x128xi32>
    %109 = arith.shrsi %35, %108 : vector<16x128xi32>
    %c1_i32_33 = arith.constant 1 : i32
    %110 = vector.broadcast %c1_i32_33 : i32 to vector<16x128xi32>
    %111 = arith.andi %109, %110 : vector<16x128xi32>
    %c3_i32_34 = arith.constant 3 : i32
    %112 = vector.broadcast %c3_i32_34 : i32 to vector<16x128xi32>
    %113 = arith.shrsi %35, %112 : vector<16x128xi32>
    %c1_i32_35 = arith.constant 1 : i32
    %114 = vector.broadcast %c1_i32_35 : i32 to vector<16x128xi32>
    %115 = arith.andi %113, %114 : vector<16x128xi32>
    %c1_i32_36 = arith.constant 1 : i32
    %116 = vector.broadcast %c1_i32_36 : i32 to vector<16x128xi32>
    %117 = arith.cmpi eq, %111, %116 : vector<16x128xi32>
    %118 = arith.cmpi eq, %111, %115 : vector<16x128xi32>
    %c2_i32_37 = arith.constant 2 : i32
    %119 = tpu.dynamic_rotate %107 by %c2_i32_37 dim 1 : vector<16x128xf32>, i32 -> vector<16x128xf32>
    %c126_i32_38 = arith.constant 126 : i32
    %120 = tpu.dynamic_rotate %107 by %c126_i32_38 dim 1 : vector<16x128xf32>, i32 -> vector<16x128xf32>
    %121 = arith.select %117, %119, %120 : vector<16x128xi1>, vector<16x128xf32>
    %122 = arith.minimumf %107, %121 : vector<16x128xf32>
    %123 = arith.maximumf %107, %121 : vector<16x128xf32>
    %124 = arith.select %118, %122, %123 : vector<16x128xi1>, vector<16x128xf32>
    %c0_i32_39 = arith.constant 0 : i32
    %125 = vector.broadcast %c0_i32_39 : i32 to vector<16x128xi32>
    %126 = arith.shrsi %35, %125 : vector<16x128xi32>
    %c1_i32_40 = arith.constant 1 : i32
    %127 = vector.broadcast %c1_i32_40 : i32 to vector<16x128xi32>
    %128 = arith.andi %126, %127 : vector<16x128xi32>
    %c3_i32_41 = arith.constant 3 : i32
    %129 = vector.broadcast %c3_i32_41 : i32 to vector<16x128xi32>
    %130 = arith.shrsi %35, %129 : vector<16x128xi32>
    %c1_i32_42 = arith.constant 1 : i32
    %131 = vector.broadcast %c1_i32_42 : i32 to vector<16x128xi32>
    %132 = arith.andi %130, %131 : vector<16x128xi32>
    %c1_i32_43 = arith.constant 1 : i32
    %133 = vector.broadcast %c1_i32_43 : i32 to vector<16x128xi32>
    %134 = arith.cmpi eq, %128, %133 : vector<16x128xi32>
    %135 = arith.cmpi eq, %128, %132 : vector<16x128xi32>
    %c1_i32_44 = arith.constant 1 : i32
    %136 = tpu.dynamic_rotate %124 by %c1_i32_44 dim 1 : vector<16x128xf32>, i32 -> vector<16x128xf32>
    %c127_i32_45 = arith.constant 127 : i32
    %137 = tpu.dynamic_rotate %124 by %c127_i32_45 dim 1 : vector<16x128xf32>, i32 -> vector<16x128xf32>
    %138 = arith.select %134, %136, %137 : vector<16x128xi1>, vector<16x128xf32>
    %139 = arith.minimumf %124, %138 : vector<16x128xf32>
    %140 = arith.maximumf %124, %138 : vector<16x128xf32>
    %141 = arith.select %135, %139, %140 : vector<16x128xi1>, vector<16x128xf32>
    %c3_i32_46 = arith.constant 3 : i32
    %142 = vector.broadcast %c3_i32_46 : i32 to vector<16x128xi32>
    %143 = arith.shrsi %35, %142 : vector<16x128xi32>
    %c1_i32_47 = arith.constant 1 : i32
    %144 = vector.broadcast %c1_i32_47 : i32 to vector<16x128xi32>
    %145 = arith.andi %143, %144 : vector<16x128xi32>
    %c4_i32_48 = arith.constant 4 : i32
    %146 = vector.broadcast %c4_i32_48 : i32 to vector<16x128xi32>
    %147 = arith.shrsi %35, %146 : vector<16x128xi32>
    %c1_i32_49 = arith.constant 1 : i32
    %148 = vector.broadcast %c1_i32_49 : i32 to vector<16x128xi32>
    %149 = arith.andi %147, %148 : vector<16x128xi32>
    %c1_i32_50 = arith.constant 1 : i32
    %150 = vector.broadcast %c1_i32_50 : i32 to vector<16x128xi32>
    %151 = arith.cmpi eq, %145, %150 : vector<16x128xi32>
    %152 = arith.cmpi eq, %145, %149 : vector<16x128xi32>
    %c8_i32 = arith.constant 8 : i32
    %153 = tpu.dynamic_rotate %141 by %c8_i32 dim 1 : vector<16x128xf32>, i32 -> vector<16x128xf32>
    %c120_i32 = arith.constant 120 : i32
    %154 = tpu.dynamic_rotate %141 by %c120_i32 dim 1 : vector<16x128xf32>, i32 -> vector<16x128xf32>
    %155 = arith.select %151, %153, %154 : vector<16x128xi1>, vector<16x128xf32>
    %156 = arith.minimumf %141, %155 : vector<16x128xf32>
    %157 = arith.maximumf %141, %155 : vector<16x128xf32>
    %158 = arith.select %152, %156, %157 : vector<16x128xi1>, vector<16x128xf32>
    %c2_i32_51 = arith.constant 2 : i32
    %159 = vector.broadcast %c2_i32_51 : i32 to vector<16x128xi32>
    %160 = arith.shrsi %35, %159 : vector<16x128xi32>
    %c1_i32_52 = arith.constant 1 : i32
    %161 = vector.broadcast %c1_i32_52 : i32 to vector<16x128xi32>
    %162 = arith.andi %160, %161 : vector<16x128xi32>
    %c4_i32_53 = arith.constant 4 : i32
    %163 = vector.broadcast %c4_i32_53 : i32 to vector<16x128xi32>
    %164 = arith.shrsi %35, %163 : vector<16x128xi32>
    %c1_i32_54 = arith.constant 1 : i32
    %165 = vector.broadcast %c1_i32_54 : i32 to vector<16x128xi32>
    %166 = arith.andi %164, %165 : vector<16x128xi32>
    %c1_i32_55 = arith.constant 1 : i32
    %167 = vector.broadcast %c1_i32_55 : i32 to vector<16x128xi32>
    %168 = arith.cmpi eq, %162, %167 : vector<16x128xi32>
    %169 = arith.cmpi eq, %162, %166 : vector<16x128xi32>
    %c4_i32_56 = arith.constant 4 : i32
    %170 = tpu.dynamic_rotate %158 by %c4_i32_56 dim 1 : vector<16x128xf32>, i32 -> vector<16x128xf32>
    %c124_i32_57 = arith.constant 124 : i32
    %171 = tpu.dynamic_rotate %158 by %c124_i32_57 dim 1 : vector<16x128xf32>, i32 -> vector<16x128xf32>
    %172 = arith.select %168, %170, %171 : vector<16x128xi1>, vector<16x128xf32>
    %173 = arith.minimumf %158, %172 : vector<16x128xf32>
    %174 = arith.maximumf %158, %172 : vector<16x128xf32>
    %175 = arith.select %169, %173, %174 : vector<16x128xi1>, vector<16x128xf32>
    %c1_i32_58 = arith.constant 1 : i32
    %176 = vector.broadcast %c1_i32_58 : i32 to vector<16x128xi32>
    %177 = arith.shrsi %35, %176 : vector<16x128xi32>
    %c1_i32_59 = arith.constant 1 : i32
    %178 = vector.broadcast %c1_i32_59 : i32 to vector<16x128xi32>
    %179 = arith.andi %177, %178 : vector<16x128xi32>
    %c4_i32_60 = arith.constant 4 : i32
    %180 = vector.broadcast %c4_i32_60 : i32 to vector<16x128xi32>
    %181 = arith.shrsi %35, %180 : vector<16x128xi32>
    %c1_i32_61 = arith.constant 1 : i32
    %182 = vector.broadcast %c1_i32_61 : i32 to vector<16x128xi32>
    %183 = arith.andi %181, %182 : vector<16x128xi32>
    %c1_i32_62 = arith.constant 1 : i32
    %184 = vector.broadcast %c1_i32_62 : i32 to vector<16x128xi32>
    %185 = arith.cmpi eq, %179, %184 : vector<16x128xi32>
    %186 = arith.cmpi eq, %179, %183 : vector<16x128xi32>
    %c2_i32_63 = arith.constant 2 : i32
    %187 = tpu.dynamic_rotate %175 by %c2_i32_63 dim 1 : vector<16x128xf32>, i32 -> vector<16x128xf32>
    %c126_i32_64 = arith.constant 126 : i32
    %188 = tpu.dynamic_rotate %175 by %c126_i32_64 dim 1 : vector<16x128xf32>, i32 -> vector<16x128xf32>
    %189 = arith.select %185, %187, %188 : vector<16x128xi1>, vector<16x128xf32>
    %190 = arith.minimumf %175, %189 : vector<16x128xf32>
    %191 = arith.maximumf %175, %189 : vector<16x128xf32>
    %192 = arith.select %186, %190, %191 : vector<16x128xi1>, vector<16x128xf32>
    %c0_i32_65 = arith.constant 0 : i32
    %193 = vector.broadcast %c0_i32_65 : i32 to vector<16x128xi32>
    %194 = arith.shrsi %35, %193 : vector<16x128xi32>
    %c1_i32_66 = arith.constant 1 : i32
    %195 = vector.broadcast %c1_i32_66 : i32 to vector<16x128xi32>
    %196 = arith.andi %194, %195 : vector<16x128xi32>
    %c4_i32_67 = arith.constant 4 : i32
    %197 = vector.broadcast %c4_i32_67 : i32 to vector<16x128xi32>
    %198 = arith.shrsi %35, %197 : vector<16x128xi32>
    %c1_i32_68 = arith.constant 1 : i32
    %199 = vector.broadcast %c1_i32_68 : i32 to vector<16x128xi32>
    %200 = arith.andi %198, %199 : vector<16x128xi32>
    %c1_i32_69 = arith.constant 1 : i32
    %201 = vector.broadcast %c1_i32_69 : i32 to vector<16x128xi32>
    %202 = arith.cmpi eq, %196, %201 : vector<16x128xi32>
    %203 = arith.cmpi eq, %196, %200 : vector<16x128xi32>
    %c1_i32_70 = arith.constant 1 : i32
    %204 = tpu.dynamic_rotate %192 by %c1_i32_70 dim 1 : vector<16x128xf32>, i32 -> vector<16x128xf32>
    %c127_i32_71 = arith.constant 127 : i32
    %205 = tpu.dynamic_rotate %192 by %c127_i32_71 dim 1 : vector<16x128xf32>, i32 -> vector<16x128xf32>
    %206 = arith.select %202, %204, %205 : vector<16x128xi1>, vector<16x128xf32>
    %207 = arith.minimumf %192, %206 : vector<16x128xf32>
    %208 = arith.maximumf %192, %206 : vector<16x128xf32>
    %209 = arith.select %203, %207, %208 : vector<16x128xi1>, vector<16x128xf32>
    %c4_i32_72 = arith.constant 4 : i32
    %210 = vector.broadcast %c4_i32_72 : i32 to vector<16x128xi32>
    %211 = arith.shrsi %35, %210 : vector<16x128xi32>
    %c1_i32_73 = arith.constant 1 : i32
    %212 = vector.broadcast %c1_i32_73 : i32 to vector<16x128xi32>
    %213 = arith.andi %211, %212 : vector<16x128xi32>
    %c5_i32 = arith.constant 5 : i32
    %214 = vector.broadcast %c5_i32 : i32 to vector<16x128xi32>
    %215 = arith.shrsi %35, %214 : vector<16x128xi32>
    %c1_i32_74 = arith.constant 1 : i32
    %216 = vector.broadcast %c1_i32_74 : i32 to vector<16x128xi32>
    %217 = arith.andi %215, %216 : vector<16x128xi32>
    %c1_i32_75 = arith.constant 1 : i32
    %218 = vector.broadcast %c1_i32_75 : i32 to vector<16x128xi32>
    %219 = arith.cmpi eq, %213, %218 : vector<16x128xi32>
    %220 = arith.cmpi eq, %213, %217 : vector<16x128xi32>
    %c16_i32_76 = arith.constant 16 : i32
    %221 = tpu.dynamic_rotate %209 by %c16_i32_76 dim 1 : vector<16x128xf32>, i32 -> vector<16x128xf32>
    %c112_i32 = arith.constant 112 : i32
    %222 = tpu.dynamic_rotate %209 by %c112_i32 dim 1 : vector<16x128xf32>, i32 -> vector<16x128xf32>
    %223 = arith.select %219, %221, %222 : vector<16x128xi1>, vector<16x128xf32>
    %224 = arith.minimumf %209, %223 : vector<16x128xf32>
    %225 = arith.maximumf %209, %223 : vector<16x128xf32>
    %226 = arith.select %220, %224, %225 : vector<16x128xi1>, vector<16x128xf32>
    %c3_i32_77 = arith.constant 3 : i32
    %227 = vector.broadcast %c3_i32_77 : i32 to vector<16x128xi32>
    %228 = arith.shrsi %35, %227 : vector<16x128xi32>
    %c1_i32_78 = arith.constant 1 : i32
    %229 = vector.broadcast %c1_i32_78 : i32 to vector<16x128xi32>
    %230 = arith.andi %228, %229 : vector<16x128xi32>
    %c5_i32_79 = arith.constant 5 : i32
    %231 = vector.broadcast %c5_i32_79 : i32 to vector<16x128xi32>
    %232 = arith.shrsi %35, %231 : vector<16x128xi32>
    %c1_i32_80 = arith.constant 1 : i32
    %233 = vector.broadcast %c1_i32_80 : i32 to vector<16x128xi32>
    %234 = arith.andi %232, %233 : vector<16x128xi32>
    %c1_i32_81 = arith.constant 1 : i32
    %235 = vector.broadcast %c1_i32_81 : i32 to vector<16x128xi32>
    %236 = arith.cmpi eq, %230, %235 : vector<16x128xi32>
    %237 = arith.cmpi eq, %230, %234 : vector<16x128xi32>
    %c8_i32_82 = arith.constant 8 : i32
    %238 = tpu.dynamic_rotate %226 by %c8_i32_82 dim 1 : vector<16x128xf32>, i32 -> vector<16x128xf32>
    %c120_i32_83 = arith.constant 120 : i32
    %239 = tpu.dynamic_rotate %226 by %c120_i32_83 dim 1 : vector<16x128xf32>, i32 -> vector<16x128xf32>
    %240 = arith.select %236, %238, %239 : vector<16x128xi1>, vector<16x128xf32>
    %241 = arith.minimumf %226, %240 : vector<16x128xf32>
    %242 = arith.maximumf %226, %240 : vector<16x128xf32>
    %243 = arith.select %237, %241, %242 : vector<16x128xi1>, vector<16x128xf32>
    %c2_i32_84 = arith.constant 2 : i32
    %244 = vector.broadcast %c2_i32_84 : i32 to vector<16x128xi32>
    %245 = arith.shrsi %35, %244 : vector<16x128xi32>
    %c1_i32_85 = arith.constant 1 : i32
    %246 = vector.broadcast %c1_i32_85 : i32 to vector<16x128xi32>
    %247 = arith.andi %245, %246 : vector<16x128xi32>
    %c5_i32_86 = arith.constant 5 : i32
    %248 = vector.broadcast %c5_i32_86 : i32 to vector<16x128xi32>
    %249 = arith.shrsi %35, %248 : vector<16x128xi32>
    %c1_i32_87 = arith.constant 1 : i32
    %250 = vector.broadcast %c1_i32_87 : i32 to vector<16x128xi32>
    %251 = arith.andi %249, %250 : vector<16x128xi32>
    %c1_i32_88 = arith.constant 1 : i32
    %252 = vector.broadcast %c1_i32_88 : i32 to vector<16x128xi32>
    %253 = arith.cmpi eq, %247, %252 : vector<16x128xi32>
    %254 = arith.cmpi eq, %247, %251 : vector<16x128xi32>
    %c4_i32_89 = arith.constant 4 : i32
    %255 = tpu.dynamic_rotate %243 by %c4_i32_89 dim 1 : vector<16x128xf32>, i32 -> vector<16x128xf32>
    %c124_i32_90 = arith.constant 124 : i32
    %256 = tpu.dynamic_rotate %243 by %c124_i32_90 dim 1 : vector<16x128xf32>, i32 -> vector<16x128xf32>
    %257 = arith.select %253, %255, %256 : vector<16x128xi1>, vector<16x128xf32>
    %258 = arith.minimumf %243, %257 : vector<16x128xf32>
    %259 = arith.maximumf %243, %257 : vector<16x128xf32>
    %260 = arith.select %254, %258, %259 : vector<16x128xi1>, vector<16x128xf32>
    %c1_i32_91 = arith.constant 1 : i32
    %261 = vector.broadcast %c1_i32_91 : i32 to vector<16x128xi32>
    %262 = arith.shrsi %35, %261 : vector<16x128xi32>
    %c1_i32_92 = arith.constant 1 : i32
    %263 = vector.broadcast %c1_i32_92 : i32 to vector<16x128xi32>
    %264 = arith.andi %262, %263 : vector<16x128xi32>
    %c5_i32_93 = arith.constant 5 : i32
    %265 = vector.broadcast %c5_i32_93 : i32 to vector<16x128xi32>
    %266 = arith.shrsi %35, %265 : vector<16x128xi32>
    %c1_i32_94 = arith.constant 1 : i32
    %267 = vector.broadcast %c1_i32_94 : i32 to vector<16x128xi32>
    %268 = arith.andi %266, %267 : vector<16x128xi32>
    %c1_i32_95 = arith.constant 1 : i32
    %269 = vector.broadcast %c1_i32_95 : i32 to vector<16x128xi32>
    %270 = arith.cmpi eq, %264, %269 : vector<16x128xi32>
    %271 = arith.cmpi eq, %264, %268 : vector<16x128xi32>
    %c2_i32_96 = arith.constant 2 : i32
    %272 = tpu.dynamic_rotate %260 by %c2_i32_96 dim 1 : vector<16x128xf32>, i32 -> vector<16x128xf32>
    %c126_i32_97 = arith.constant 126 : i32
    %273 = tpu.dynamic_rotate %260 by %c126_i32_97 dim 1 : vector<16x128xf32>, i32 -> vector<16x128xf32>
    %274 = arith.select %270, %272, %273 : vector<16x128xi1>, vector<16x128xf32>
    %275 = arith.minimumf %260, %274 : vector<16x128xf32>
    %276 = arith.maximumf %260, %274 : vector<16x128xf32>
    %277 = arith.select %271, %275, %276 : vector<16x128xi1>, vector<16x128xf32>
    %c0_i32_98 = arith.constant 0 : i32
    %278 = vector.broadcast %c0_i32_98 : i32 to vector<16x128xi32>
    %279 = arith.shrsi %35, %278 : vector<16x128xi32>
    %c1_i32_99 = arith.constant 1 : i32
    %280 = vector.broadcast %c1_i32_99 : i32 to vector<16x128xi32>
    %281 = arith.andi %279, %280 : vector<16x128xi32>
    %c5_i32_100 = arith.constant 5 : i32
    %282 = vector.broadcast %c5_i32_100 : i32 to vector<16x128xi32>
    %283 = arith.shrsi %35, %282 : vector<16x128xi32>
    %c1_i32_101 = arith.constant 1 : i32
    %284 = vector.broadcast %c1_i32_101 : i32 to vector<16x128xi32>
    %285 = arith.andi %283, %284 : vector<16x128xi32>
    %c1_i32_102 = arith.constant 1 : i32
    %286 = vector.broadcast %c1_i32_102 : i32 to vector<16x128xi32>
    %287 = arith.cmpi eq, %281, %286 : vector<16x128xi32>
    %288 = arith.cmpi eq, %281, %285 : vector<16x128xi32>
    %c1_i32_103 = arith.constant 1 : i32
    %289 = tpu.dynamic_rotate %277 by %c1_i32_103 dim 1 : vector<16x128xf32>, i32 -> vector<16x128xf32>
    %c127_i32_104 = arith.constant 127 : i32
    %290 = tpu.dynamic_rotate %277 by %c127_i32_104 dim 1 : vector<16x128xf32>, i32 -> vector<16x128xf32>
    %291 = arith.select %287, %289, %290 : vector<16x128xi1>, vector<16x128xf32>
    %292 = arith.minimumf %277, %291 : vector<16x128xf32>
    %293 = arith.maximumf %277, %291 : vector<16x128xf32>
    %294 = arith.select %288, %292, %293 : vector<16x128xi1>, vector<16x128xf32>
    %c5_i32_105 = arith.constant 5 : i32
    %295 = vector.broadcast %c5_i32_105 : i32 to vector<16x128xi32>
    %296 = arith.shrsi %35, %295 : vector<16x128xi32>
    %c1_i32_106 = arith.constant 1 : i32
    %297 = vector.broadcast %c1_i32_106 : i32 to vector<16x128xi32>
    %298 = arith.andi %296, %297 : vector<16x128xi32>
    %c6_i32 = arith.constant 6 : i32
    %299 = vector.broadcast %c6_i32 : i32 to vector<16x128xi32>
    %300 = arith.shrsi %35, %299 : vector<16x128xi32>
    %c1_i32_107 = arith.constant 1 : i32
    %301 = vector.broadcast %c1_i32_107 : i32 to vector<16x128xi32>
    %302 = arith.andi %300, %301 : vector<16x128xi32>
    %c1_i32_108 = arith.constant 1 : i32
    %303 = vector.broadcast %c1_i32_108 : i32 to vector<16x128xi32>
    %304 = arith.cmpi eq, %298, %303 : vector<16x128xi32>
    %305 = arith.cmpi eq, %298, %302 : vector<16x128xi32>
    %c32_i32 = arith.constant 32 : i32
    %306 = tpu.dynamic_rotate %294 by %c32_i32 dim 1 : vector<16x128xf32>, i32 -> vector<16x128xf32>
    %c96_i32 = arith.constant 96 : i32
    %307 = tpu.dynamic_rotate %294 by %c96_i32 dim 1 : vector<16x128xf32>, i32 -> vector<16x128xf32>
    %308 = arith.select %304, %306, %307 : vector<16x128xi1>, vector<16x128xf32>
    %309 = arith.minimumf %294, %308 : vector<16x128xf32>
    %310 = arith.maximumf %294, %308 : vector<16x128xf32>
    %311 = arith.select %305, %309, %310 : vector<16x128xi1>, vector<16x128xf32>
    %c4_i32_109 = arith.constant 4 : i32
    %312 = vector.broadcast %c4_i32_109 : i32 to vector<16x128xi32>
    %313 = arith.shrsi %35, %312 : vector<16x128xi32>
    %c1_i32_110 = arith.constant 1 : i32
    %314 = vector.broadcast %c1_i32_110 : i32 to vector<16x128xi32>
    %315 = arith.andi %313, %314 : vector<16x128xi32>
    %c6_i32_111 = arith.constant 6 : i32
    %316 = vector.broadcast %c6_i32_111 : i32 to vector<16x128xi32>
    %317 = arith.shrsi %35, %316 : vector<16x128xi32>
    %c1_i32_112 = arith.constant 1 : i32
    %318 = vector.broadcast %c1_i32_112 : i32 to vector<16x128xi32>
    %319 = arith.andi %317, %318 : vector<16x128xi32>
    %c1_i32_113 = arith.constant 1 : i32
    %320 = vector.broadcast %c1_i32_113 : i32 to vector<16x128xi32>
    %321 = arith.cmpi eq, %315, %320 : vector<16x128xi32>
    %322 = arith.cmpi eq, %315, %319 : vector<16x128xi32>
    %c16_i32_114 = arith.constant 16 : i32
    %323 = tpu.dynamic_rotate %311 by %c16_i32_114 dim 1 : vector<16x128xf32>, i32 -> vector<16x128xf32>
    %c112_i32_115 = arith.constant 112 : i32
    %324 = tpu.dynamic_rotate %311 by %c112_i32_115 dim 1 : vector<16x128xf32>, i32 -> vector<16x128xf32>
    %325 = arith.select %321, %323, %324 : vector<16x128xi1>, vector<16x128xf32>
    %326 = arith.minimumf %311, %325 : vector<16x128xf32>
    %327 = arith.maximumf %311, %325 : vector<16x128xf32>
    %328 = arith.select %322, %326, %327 : vector<16x128xi1>, vector<16x128xf32>
    %c3_i32_116 = arith.constant 3 : i32
    %329 = vector.broadcast %c3_i32_116 : i32 to vector<16x128xi32>
    %330 = arith.shrsi %35, %329 : vector<16x128xi32>
    %c1_i32_117 = arith.constant 1 : i32
    %331 = vector.broadcast %c1_i32_117 : i32 to vector<16x128xi32>
    %332 = arith.andi %330, %331 : vector<16x128xi32>
    %c6_i32_118 = arith.constant 6 : i32
    %333 = vector.broadcast %c6_i32_118 : i32 to vector<16x128xi32>
    %334 = arith.shrsi %35, %333 : vector<16x128xi32>
    %c1_i32_119 = arith.constant 1 : i32
    %335 = vector.broadcast %c1_i32_119 : i32 to vector<16x128xi32>
    %336 = arith.andi %334, %335 : vector<16x128xi32>
    %c1_i32_120 = arith.constant 1 : i32
    %337 = vector.broadcast %c1_i32_120 : i32 to vector<16x128xi32>
    %338 = arith.cmpi eq, %332, %337 : vector<16x128xi32>
    %339 = arith.cmpi eq, %332, %336 : vector<16x128xi32>
    %c8_i32_121 = arith.constant 8 : i32
    %340 = tpu.dynamic_rotate %328 by %c8_i32_121 dim 1 : vector<16x128xf32>, i32 -> vector<16x128xf32>
    %c120_i32_122 = arith.constant 120 : i32
    %341 = tpu.dynamic_rotate %328 by %c120_i32_122 dim 1 : vector<16x128xf32>, i32 -> vector<16x128xf32>
    %342 = arith.select %338, %340, %341 : vector<16x128xi1>, vector<16x128xf32>
    %343 = arith.minimumf %328, %342 : vector<16x128xf32>
    %344 = arith.maximumf %328, %342 : vector<16x128xf32>
    %345 = arith.select %339, %343, %344 : vector<16x128xi1>, vector<16x128xf32>
    %c2_i32_123 = arith.constant 2 : i32
    %346 = vector.broadcast %c2_i32_123 : i32 to vector<16x128xi32>
    %347 = arith.shrsi %35, %346 : vector<16x128xi32>
    %c1_i32_124 = arith.constant 1 : i32
    %348 = vector.broadcast %c1_i32_124 : i32 to vector<16x128xi32>
    %349 = arith.andi %347, %348 : vector<16x128xi32>
    %c6_i32_125 = arith.constant 6 : i32
    %350 = vector.broadcast %c6_i32_125 : i32 to vector<16x128xi32>
    %351 = arith.shrsi %35, %350 : vector<16x128xi32>
    %c1_i32_126 = arith.constant 1 : i32
    %352 = vector.broadcast %c1_i32_126 : i32 to vector<16x128xi32>
    %353 = arith.andi %351, %352 : vector<16x128xi32>
    %c1_i32_127 = arith.constant 1 : i32
    %354 = vector.broadcast %c1_i32_127 : i32 to vector<16x128xi32>
    %355 = arith.cmpi eq, %349, %354 : vector<16x128xi32>
    %356 = arith.cmpi eq, %349, %353 : vector<16x128xi32>
    %c4_i32_128 = arith.constant 4 : i32
    %357 = tpu.dynamic_rotate %345 by %c4_i32_128 dim 1 : vector<16x128xf32>, i32 -> vector<16x128xf32>
    %c124_i32_129 = arith.constant 124 : i32
    %358 = tpu.dynamic_rotate %345 by %c124_i32_129 dim 1 : vector<16x128xf32>, i32 -> vector<16x128xf32>
    %359 = arith.select %355, %357, %358 : vector<16x128xi1>, vector<16x128xf32>
    %360 = arith.minimumf %345, %359 : vector<16x128xf32>
    %361 = arith.maximumf %345, %359 : vector<16x128xf32>
    %362 = arith.select %356, %360, %361 : vector<16x128xi1>, vector<16x128xf32>
    %c1_i32_130 = arith.constant 1 : i32
    %363 = vector.broadcast %c1_i32_130 : i32 to vector<16x128xi32>
    %364 = arith.shrsi %35, %363 : vector<16x128xi32>
    %c1_i32_131 = arith.constant 1 : i32
    %365 = vector.broadcast %c1_i32_131 : i32 to vector<16x128xi32>
    %366 = arith.andi %364, %365 : vector<16x128xi32>
    %c6_i32_132 = arith.constant 6 : i32
    %367 = vector.broadcast %c6_i32_132 : i32 to vector<16x128xi32>
    %368 = arith.shrsi %35, %367 : vector<16x128xi32>
    %c1_i32_133 = arith.constant 1 : i32
    %369 = vector.broadcast %c1_i32_133 : i32 to vector<16x128xi32>
    %370 = arith.andi %368, %369 : vector<16x128xi32>
    %c1_i32_134 = arith.constant 1 : i32
    %371 = vector.broadcast %c1_i32_134 : i32 to vector<16x128xi32>
    %372 = arith.cmpi eq, %366, %371 : vector<16x128xi32>
    %373 = arith.cmpi eq, %366, %370 : vector<16x128xi32>
    %c2_i32_135 = arith.constant 2 : i32
    %374 = tpu.dynamic_rotate %362 by %c2_i32_135 dim 1 : vector<16x128xf32>, i32 -> vector<16x128xf32>
    %c126_i32_136 = arith.constant 126 : i32
    %375 = tpu.dynamic_rotate %362 by %c126_i32_136 dim 1 : vector<16x128xf32>, i32 -> vector<16x128xf32>
    %376 = arith.select %372, %374, %375 : vector<16x128xi1>, vector<16x128xf32>
    %377 = arith.minimumf %362, %376 : vector<16x128xf32>
    %378 = arith.maximumf %362, %376 : vector<16x128xf32>
    %379 = arith.select %373, %377, %378 : vector<16x128xi1>, vector<16x128xf32>
    %c0_i32_137 = arith.constant 0 : i32
    %380 = vector.broadcast %c0_i32_137 : i32 to vector<16x128xi32>
    %381 = arith.shrsi %35, %380 : vector<16x128xi32>
    %c1_i32_138 = arith.constant 1 : i32
    %382 = vector.broadcast %c1_i32_138 : i32 to vector<16x128xi32>
    %383 = arith.andi %381, %382 : vector<16x128xi32>
    %c6_i32_139 = arith.constant 6 : i32
    %384 = vector.broadcast %c6_i32_139 : i32 to vector<16x128xi32>
    %385 = arith.shrsi %35, %384 : vector<16x128xi32>
    %c1_i32_140 = arith.constant 1 : i32
    %386 = vector.broadcast %c1_i32_140 : i32 to vector<16x128xi32>
    %387 = arith.andi %385, %386 : vector<16x128xi32>
    %c1_i32_141 = arith.constant 1 : i32
    %388 = vector.broadcast %c1_i32_141 : i32 to vector<16x128xi32>
    %389 = arith.cmpi eq, %383, %388 : vector<16x128xi32>
    %390 = arith.cmpi eq, %383, %387 : vector<16x128xi32>
    %c1_i32_142 = arith.constant 1 : i32
    %391 = tpu.dynamic_rotate %379 by %c1_i32_142 dim 1 : vector<16x128xf32>, i32 -> vector<16x128xf32>
    %c127_i32_143 = arith.constant 127 : i32
    %392 = tpu.dynamic_rotate %379 by %c127_i32_143 dim 1 : vector<16x128xf32>, i32 -> vector<16x128xf32>
    %393 = arith.select %389, %391, %392 : vector<16x128xi1>, vector<16x128xf32>
    %394 = arith.minimumf %379, %393 : vector<16x128xf32>
    %395 = arith.maximumf %379, %393 : vector<16x128xf32>
    %396 = arith.select %390, %394, %395 : vector<16x128xi1>, vector<16x128xf32>
    %c6_i32_144 = arith.constant 6 : i32
    %397 = vector.broadcast %c6_i32_144 : i32 to vector<16x128xi32>
    %398 = arith.shrsi %35, %397 : vector<16x128xi32>
    %c1_i32_145 = arith.constant 1 : i32
    %399 = vector.broadcast %c1_i32_145 : i32 to vector<16x128xi32>
    %400 = arith.andi %398, %399 : vector<16x128xi32>
    %c7_i32 = arith.constant 7 : i32
    %401 = vector.broadcast %c7_i32 : i32 to vector<16x128xi32>
    %402 = arith.shrsi %35, %401 : vector<16x128xi32>
    %c1_i32_146 = arith.constant 1 : i32
    %403 = vector.broadcast %c1_i32_146 : i32 to vector<16x128xi32>
    %404 = arith.andi %402, %403 : vector<16x128xi32>
    %c1_i32_147 = arith.constant 1 : i32
    %405 = vector.broadcast %c1_i32_147 : i32 to vector<16x128xi32>
    %406 = arith.cmpi eq, %400, %405 : vector<16x128xi32>
    %407 = arith.cmpi eq, %400, %404 : vector<16x128xi32>
    %c64_i32 = arith.constant 64 : i32
    %408 = tpu.dynamic_rotate %396 by %c64_i32 dim 1 : vector<16x128xf32>, i32 -> vector<16x128xf32>
    %c64_i32_148 = arith.constant 64 : i32
    %409 = tpu.dynamic_rotate %396 by %c64_i32_148 dim 1 : vector<16x128xf32>, i32 -> vector<16x128xf32>
    %410 = arith.select %406, %408, %409 : vector<16x128xi1>, vector<16x128xf32>
    %411 = arith.minimumf %396, %410 : vector<16x128xf32>
    %412 = arith.maximumf %396, %410 : vector<16x128xf32>
    %413 = arith.select %407, %411, %412 : vector<16x128xi1>, vector<16x128xf32>
    %c5_i32_149 = arith.constant 5 : i32
    %414 = vector.broadcast %c5_i32_149 : i32 to vector<16x128xi32>
    %415 = arith.shrsi %35, %414 : vector<16x128xi32>
    %c1_i32_150 = arith.constant 1 : i32
    %416 = vector.broadcast %c1_i32_150 : i32 to vector<16x128xi32>
    %417 = arith.andi %415, %416 : vector<16x128xi32>
    %c7_i32_151 = arith.constant 7 : i32
    %418 = vector.broadcast %c7_i32_151 : i32 to vector<16x128xi32>
    %419 = arith.shrsi %35, %418 : vector<16x128xi32>
    %c1_i32_152 = arith.constant 1 : i32
    %420 = vector.broadcast %c1_i32_152 : i32 to vector<16x128xi32>
    %421 = arith.andi %419, %420 : vector<16x128xi32>
    %c1_i32_153 = arith.constant 1 : i32
    %422 = vector.broadcast %c1_i32_153 : i32 to vector<16x128xi32>
    %423 = arith.cmpi eq, %417, %422 : vector<16x128xi32>
    %424 = arith.cmpi eq, %417, %421 : vector<16x128xi32>
    %c32_i32_154 = arith.constant 32 : i32
    %425 = tpu.dynamic_rotate %413 by %c32_i32_154 dim 1 : vector<16x128xf32>, i32 -> vector<16x128xf32>
    %c96_i32_155 = arith.constant 96 : i32
    %426 = tpu.dynamic_rotate %413 by %c96_i32_155 dim 1 : vector<16x128xf32>, i32 -> vector<16x128xf32>
    %427 = arith.select %423, %425, %426 : vector<16x128xi1>, vector<16x128xf32>
    %428 = arith.minimumf %413, %427 : vector<16x128xf32>
    %429 = arith.maximumf %413, %427 : vector<16x128xf32>
    %430 = arith.select %424, %428, %429 : vector<16x128xi1>, vector<16x128xf32>
    %c4_i32_156 = arith.constant 4 : i32
    %431 = vector.broadcast %c4_i32_156 : i32 to vector<16x128xi32>
    %432 = arith.shrsi %35, %431 : vector<16x128xi32>
    %c1_i32_157 = arith.constant 1 : i32
    %433 = vector.broadcast %c1_i32_157 : i32 to vector<16x128xi32>
    %434 = arith.andi %432, %433 : vector<16x128xi32>
    %c7_i32_158 = arith.constant 7 : i32
    %435 = vector.broadcast %c7_i32_158 : i32 to vector<16x128xi32>
    %436 = arith.shrsi %35, %435 : vector<16x128xi32>
    %c1_i32_159 = arith.constant 1 : i32
    %437 = vector.broadcast %c1_i32_159 : i32 to vector<16x128xi32>
    %438 = arith.andi %436, %437 : vector<16x128xi32>
    %c1_i32_160 = arith.constant 1 : i32
    %439 = vector.broadcast %c1_i32_160 : i32 to vector<16x128xi32>
    %440 = arith.cmpi eq, %434, %439 : vector<16x128xi32>
    %441 = arith.cmpi eq, %434, %438 : vector<16x128xi32>
    %c16_i32_161 = arith.constant 16 : i32
    %442 = tpu.dynamic_rotate %430 by %c16_i32_161 dim 1 : vector<16x128xf32>, i32 -> vector<16x128xf32>
    %c112_i32_162 = arith.constant 112 : i32
    %443 = tpu.dynamic_rotate %430 by %c112_i32_162 dim 1 : vector<16x128xf32>, i32 -> vector<16x128xf32>
    %444 = arith.select %440, %442, %443 : vector<16x128xi1>, vector<16x128xf32>
    %445 = arith.minimumf %430, %444 : vector<16x128xf32>
    %446 = arith.maximumf %430, %444 : vector<16x128xf32>
    %447 = arith.select %441, %445, %446 : vector<16x128xi1>, vector<16x128xf32>
    %c3_i32_163 = arith.constant 3 : i32
    %448 = vector.broadcast %c3_i32_163 : i32 to vector<16x128xi32>
    %449 = arith.shrsi %35, %448 : vector<16x128xi32>
    %c1_i32_164 = arith.constant 1 : i32
    %450 = vector.broadcast %c1_i32_164 : i32 to vector<16x128xi32>
    %451 = arith.andi %449, %450 : vector<16x128xi32>
    %c7_i32_165 = arith.constant 7 : i32
    %452 = vector.broadcast %c7_i32_165 : i32 to vector<16x128xi32>
    %453 = arith.shrsi %35, %452 : vector<16x128xi32>
    %c1_i32_166 = arith.constant 1 : i32
    %454 = vector.broadcast %c1_i32_166 : i32 to vector<16x128xi32>
    %455 = arith.andi %453, %454 : vector<16x128xi32>
    %c1_i32_167 = arith.constant 1 : i32
    %456 = vector.broadcast %c1_i32_167 : i32 to vector<16x128xi32>
    %457 = arith.cmpi eq, %451, %456 : vector<16x128xi32>
    %458 = arith.cmpi eq, %451, %455 : vector<16x128xi32>
    %c8_i32_168 = arith.constant 8 : i32
    %459 = tpu.dynamic_rotate %447 by %c8_i32_168 dim 1 : vector<16x128xf32>, i32 -> vector<16x128xf32>
    %c120_i32_169 = arith.constant 120 : i32
    %460 = tpu.dynamic_rotate %447 by %c120_i32_169 dim 1 : vector<16x128xf32>, i32 -> vector<16x128xf32>
    %461 = arith.select %457, %459, %460 : vector<16x128xi1>, vector<16x128xf32>
    %462 = arith.minimumf %447, %461 : vector<16x128xf32>
    %463 = arith.maximumf %447, %461 : vector<16x128xf32>
    %464 = arith.select %458, %462, %463 : vector<16x128xi1>, vector<16x128xf32>
    %c2_i32_170 = arith.constant 2 : i32
    %465 = vector.broadcast %c2_i32_170 : i32 to vector<16x128xi32>
    %466 = arith.shrsi %35, %465 : vector<16x128xi32>
    %c1_i32_171 = arith.constant 1 : i32
    %467 = vector.broadcast %c1_i32_171 : i32 to vector<16x128xi32>
    %468 = arith.andi %466, %467 : vector<16x128xi32>
    %c7_i32_172 = arith.constant 7 : i32
    %469 = vector.broadcast %c7_i32_172 : i32 to vector<16x128xi32>
    %470 = arith.shrsi %35, %469 : vector<16x128xi32>
    %c1_i32_173 = arith.constant 1 : i32
    %471 = vector.broadcast %c1_i32_173 : i32 to vector<16x128xi32>
    %472 = arith.andi %470, %471 : vector<16x128xi32>
    %c1_i32_174 = arith.constant 1 : i32
    %473 = vector.broadcast %c1_i32_174 : i32 to vector<16x128xi32>
    %474 = arith.cmpi eq, %468, %473 : vector<16x128xi32>
    %475 = arith.cmpi eq, %468, %472 : vector<16x128xi32>
    %c4_i32_175 = arith.constant 4 : i32
    %476 = tpu.dynamic_rotate %464 by %c4_i32_175 dim 1 : vector<16x128xf32>, i32 -> vector<16x128xf32>
    %c124_i32_176 = arith.constant 124 : i32
    %477 = tpu.dynamic_rotate %464 by %c124_i32_176 dim 1 : vector<16x128xf32>, i32 -> vector<16x128xf32>
    %478 = arith.select %474, %476, %477 : vector<16x128xi1>, vector<16x128xf32>
    %479 = arith.minimumf %464, %478 : vector<16x128xf32>
    %480 = arith.maximumf %464, %478 : vector<16x128xf32>
    %481 = arith.select %475, %479, %480 : vector<16x128xi1>, vector<16x128xf32>
    %c1_i32_177 = arith.constant 1 : i32
    %482 = vector.broadcast %c1_i32_177 : i32 to vector<16x128xi32>
    %483 = arith.shrsi %35, %482 : vector<16x128xi32>
    %c1_i32_178 = arith.constant 1 : i32
    %484 = vector.broadcast %c1_i32_178 : i32 to vector<16x128xi32>
    %485 = arith.andi %483, %484 : vector<16x128xi32>
    %c7_i32_179 = arith.constant 7 : i32
    %486 = vector.broadcast %c7_i32_179 : i32 to vector<16x128xi32>
    %487 = arith.shrsi %35, %486 : vector<16x128xi32>
    %c1_i32_180 = arith.constant 1 : i32
    %488 = vector.broadcast %c1_i32_180 : i32 to vector<16x128xi32>
    %489 = arith.andi %487, %488 : vector<16x128xi32>
    %c1_i32_181 = arith.constant 1 : i32
    %490 = vector.broadcast %c1_i32_181 : i32 to vector<16x128xi32>
    %491 = arith.cmpi eq, %485, %490 : vector<16x128xi32>
    %492 = arith.cmpi eq, %485, %489 : vector<16x128xi32>
    %c2_i32_182 = arith.constant 2 : i32
    %493 = tpu.dynamic_rotate %481 by %c2_i32_182 dim 1 : vector<16x128xf32>, i32 -> vector<16x128xf32>
    %c126_i32_183 = arith.constant 126 : i32
    %494 = tpu.dynamic_rotate %481 by %c126_i32_183 dim 1 : vector<16x128xf32>, i32 -> vector<16x128xf32>
    %495 = arith.select %491, %493, %494 : vector<16x128xi1>, vector<16x128xf32>
    %496 = arith.minimumf %481, %495 : vector<16x128xf32>
    %497 = arith.maximumf %481, %495 : vector<16x128xf32>
    %498 = arith.select %492, %496, %497 : vector<16x128xi1>, vector<16x128xf32>
    %c0_i32_184 = arith.constant 0 : i32
    %499 = vector.broadcast %c0_i32_184 : i32 to vector<16x128xi32>
    %500 = arith.shrsi %35, %499 : vector<16x128xi32>
    %c1_i32_185 = arith.constant 1 : i32
    %501 = vector.broadcast %c1_i32_185 : i32 to vector<16x128xi32>
    %502 = arith.andi %500, %501 : vector<16x128xi32>
    %c7_i32_186 = arith.constant 7 : i32
    %503 = vector.broadcast %c7_i32_186 : i32 to vector<16x128xi32>
    %504 = arith.shrsi %35, %503 : vector<16x128xi32>
    %c1_i32_187 = arith.constant 1 : i32
    %505 = vector.broadcast %c1_i32_187 : i32 to vector<16x128xi32>
    %506 = arith.andi %504, %505 : vector<16x128xi32>
    %c1_i32_188 = arith.constant 1 : i32
    %507 = vector.broadcast %c1_i32_188 : i32 to vector<16x128xi32>
    %508 = arith.cmpi eq, %502, %507 : vector<16x128xi32>
    %509 = arith.cmpi eq, %502, %506 : vector<16x128xi32>
    %c1_i32_189 = arith.constant 1 : i32
    %510 = tpu.dynamic_rotate %498 by %c1_i32_189 dim 1 : vector<16x128xf32>, i32 -> vector<16x128xf32>
    %c127_i32_190 = arith.constant 127 : i32
    %511 = tpu.dynamic_rotate %498 by %c127_i32_190 dim 1 : vector<16x128xf32>, i32 -> vector<16x128xf32>
    %512 = arith.select %508, %510, %511 : vector<16x128xi1>, vector<16x128xf32>
    %513 = arith.minimumf %498, %512 : vector<16x128xf32>
    %514 = arith.maximumf %498, %512 : vector<16x128xf32>
    %515 = arith.select %509, %513, %514 : vector<16x128xi1>, vector<16x128xf32>
    %cst_191 = arith.constant 0.000000e+00 : f32
    %516 = vector.broadcast %cst_191 : f32 to vector<16x128xf32>
    %517 = arith.select %37, %515, %516 : vector<16x128xi1>, vector<16x128xf32>
    %c0_192 = arith.constant 0 : index
    %c0_193 = arith.constant 0 : index
    %518 = vector.load %arg1[%c0_192, %c0_193] : memref<128x32xf32, #tpu.memory_space<vmem>>, vector<128x32xf32>
    %cst_194 = arith.constant dense<0.000000e+00> : vector<16x32xf32>
    %519 = tpu.matmul %517, %518, %cst_194 {dimension_numbers = #tpu.dot_dimension_numbers<[1], [0], [0], [1], [0, 0, 1, 1], [], []>} : vector<16x128xf32>, vector<128x32xf32>, vector<16x32xf32> -> vector<16x32xf32>
    %c0_195 = arith.constant 0 : index
    %c0_196 = arith.constant 0 : index
    %520 = vector.load %arg2[%c0_195, %c0_196] : memref<1x32xf32, #tpu.memory_space<vmem>>, vector<1x32xf32>
    %521 = vector.broadcast %520 : vector<1x32xf32> to vector<16x32xf32>
    %522 = arith.addf %519, %521 : vector<16x32xf32>
    %cst_197 = arith.constant 0.000000e+00 : f32
    %523 = vector.broadcast %cst_197 : f32 to vector<16x32xf32>
    %524 = arith.maximumf %522, %523 : vector<16x32xf32>
    %c0_198 = arith.constant 0 : index
    %c0_199 = arith.constant 0 : index
    %525 = vector.load %arg3[%c0_198, %c0_199] : memref<32x32xf32, #tpu.memory_space<vmem>>, vector<32x32xf32>
    %cst_200 = arith.constant dense<0.000000e+00> : vector<16x32xf32>
    %526 = tpu.matmul %524, %525, %cst_200 {dimension_numbers = #tpu.dot_dimension_numbers<[1], [0], [0], [1], [0, 0, 1, 1], [], []>} : vector<16x32xf32>, vector<32x32xf32>, vector<16x32xf32> -> vector<16x32xf32>
    %c0_201 = arith.constant 0 : index
    %c0_202 = arith.constant 0 : index
    %527 = vector.load %arg4[%c0_201, %c0_202] : memref<1x32xf32, #tpu.memory_space<vmem>>, vector<1x32xf32>
    %528 = vector.broadcast %527 : vector<1x32xf32> to vector<16x32xf32>
    %529 = arith.addf %526, %528 : vector<16x32xf32>
    %530 = vector.extract_strided_slice %529 {offsets = [0, 0], sizes = [8, 32], strides = [1, 1]} : vector<16x32xf32> to vector<8x32xf32>
    %cst_203 = arith.constant dense<0xFF800000> : vector<32xf32>
    %531 = vector.multi_reduction <maximumf>, %530, %cst_203 [0] : vector<8x32xf32> to vector<32xf32>
    %532 = vector.shape_cast %531 : vector<32xf32> to vector<1x32xf32>
    %cst_204 = arith.constant dense<0x7F800000> : vector<32xf32>
    %533 = vector.multi_reduction <minimumf>, %530, %cst_204 [0] : vector<8x32xf32> to vector<32xf32>
    %534 = vector.shape_cast %533 : vector<32xf32> to vector<1x32xf32>
    %cst_205 = arith.constant dense<0.000000e+00> : vector<32xf32>
    %535 = vector.multi_reduction <add>, %530, %cst_205 [0] : vector<8x32xf32> to vector<32xf32>
    %536 = vector.shape_cast %535 : vector<32xf32> to vector<1x32xf32>
    %cst_206 = arith.constant 8.000000e+00 : f32
    %537 = vector.broadcast %cst_206 : f32 to vector<1x32xf32>
    %538 = arith.divf %536, %537 : vector<1x32xf32>
    %539 = vector.extract_strided_slice %529 {offsets = [8, 0], sizes = [8, 32], strides = [1, 1]} : vector<16x32xf32> to vector<8x32xf32>
    %cst_207 = arith.constant dense<0xFF800000> : vector<32xf32>
    %540 = vector.multi_reduction <maximumf>, %539, %cst_207 [0] : vector<8x32xf32> to vector<32xf32>
    %541 = vector.shape_cast %540 : vector<32xf32> to vector<1x32xf32>
    %cst_208 = arith.constant dense<0x7F800000> : vector<32xf32>
    %542 = vector.multi_reduction <minimumf>, %539, %cst_208 [0] : vector<8x32xf32> to vector<32xf32>
    %543 = vector.shape_cast %542 : vector<32xf32> to vector<1x32xf32>
    %cst_209 = arith.constant dense<0.000000e+00> : vector<32xf32>
    %544 = vector.multi_reduction <add>, %539, %cst_209 [0] : vector<8x32xf32> to vector<32xf32>
    %545 = vector.shape_cast %544 : vector<32xf32> to vector<1x32xf32>
    %cst_210 = arith.constant 8.000000e+00 : f32
    %546 = vector.broadcast %cst_210 : f32 to vector<1x32xf32>
    %547 = arith.divf %545, %546 : vector<1x32xf32>
    %548 = tpu.iota {dimensions = array<i32: 0>} : vector<2x32xi32>
    %549 = vector.shape_cast %532 : vector<1x32xf32> to vector<1x32xf32>
    %550 = vector.broadcast %549 : vector<1x32xf32> to vector<2x32xf32>
    %c1_i32_211 = arith.constant 1 : i32
    %551 = vector.broadcast %c1_i32_211 : i32 to vector<2x32xi32>
    %552 = arith.cmpi eq, %548, %551 : vector<2x32xi32>
    %553 = vector.shape_cast %541 : vector<1x32xf32> to vector<1x32xf32>
    %554 = vector.broadcast %553 : vector<1x32xf32> to vector<2x32xf32>
    %555 = arith.select %552, %554, %550 : vector<2x32xi1>, vector<2x32xf32>
    %556 = tpu.iota {dimensions = array<i32: 0>} : vector<2x32xi32>
    %557 = vector.shape_cast %534 : vector<1x32xf32> to vector<1x32xf32>
    %558 = vector.broadcast %557 : vector<1x32xf32> to vector<2x32xf32>
    %c1_i32_212 = arith.constant 1 : i32
    %559 = vector.broadcast %c1_i32_212 : i32 to vector<2x32xi32>
    %560 = arith.cmpi eq, %556, %559 : vector<2x32xi32>
    %561 = vector.shape_cast %543 : vector<1x32xf32> to vector<1x32xf32>
    %562 = vector.broadcast %561 : vector<1x32xf32> to vector<2x32xf32>
    %563 = arith.select %560, %562, %558 : vector<2x32xi1>, vector<2x32xf32>
    %564 = tpu.iota {dimensions = array<i32: 0>} : vector<2x32xi32>
    %565 = vector.shape_cast %538 : vector<1x32xf32> to vector<1x32xf32>
    %566 = vector.broadcast %565 : vector<1x32xf32> to vector<2x32xf32>
    %c1_i32_213 = arith.constant 1 : i32
    %567 = vector.broadcast %c1_i32_213 : i32 to vector<2x32xi32>
    %568 = arith.cmpi eq, %564, %567 : vector<2x32xi32>
    %569 = vector.shape_cast %547 : vector<1x32xf32> to vector<1x32xf32>
    %570 = vector.broadcast %569 : vector<1x32xf32> to vector<2x32xf32>
    %571 = arith.select %568, %570, %566 : vector<2x32xi1>, vector<2x32xf32>
    %c0_214 = arith.constant 0 : index
    %c0_215 = arith.constant 0 : index
    %572 = vector.load %arg5[%c0_214, %c0_215] : memref<96x32xf32, #tpu.memory_space<vmem>>, vector<32x32xf32>
    %cst_216 = arith.constant dense<0.000000e+00> : vector<2x32xf32>
    %573 = tpu.matmul %555, %572, %cst_216 {dimension_numbers = #tpu.dot_dimension_numbers<[1], [0], [0], [1], [0, 0, 1, 1], [], []>} : vector<2x32xf32>, vector<32x32xf32>, vector<2x32xf32> -> vector<2x32xf32>
    %c32 = arith.constant 32 : index
    %c0_217 = arith.constant 0 : index
    %574 = vector.load %arg5[%c32, %c0_217] : memref<96x32xf32, #tpu.memory_space<vmem>>, vector<32x32xf32>
    %cst_218 = arith.constant dense<0.000000e+00> : vector<2x32xf32>
    %575 = tpu.matmul %563, %574, %cst_218 {dimension_numbers = #tpu.dot_dimension_numbers<[1], [0], [0], [1], [0, 0, 1, 1], [], []>} : vector<2x32xf32>, vector<32x32xf32>, vector<2x32xf32> -> vector<2x32xf32>
    %576 = arith.addf %573, %575 : vector<2x32xf32>
    %c64 = arith.constant 64 : index
    %c0_219 = arith.constant 0 : index
    %577 = vector.load %arg5[%c64, %c0_219] : memref<96x32xf32, #tpu.memory_space<vmem>>, vector<32x32xf32>
    %cst_220 = arith.constant dense<0.000000e+00> : vector<2x32xf32>
    %578 = tpu.matmul %571, %577, %cst_220 {dimension_numbers = #tpu.dot_dimension_numbers<[1], [0], [0], [1], [0, 0, 1, 1], [], []>} : vector<2x32xf32>, vector<32x32xf32>, vector<2x32xf32> -> vector<2x32xf32>
    %579 = arith.addf %576, %578 : vector<2x32xf32>
    %c0_221 = arith.constant 0 : index
    %c0_222 = arith.constant 0 : index
    %580 = vector.load %arg6[%c0_221, %c0_222] : memref<1x32xf32, #tpu.memory_space<vmem>>, vector<1x32xf32>
    %581 = vector.broadcast %580 : vector<1x32xf32> to vector<2x32xf32>
    %582 = arith.addf %579, %581 : vector<2x32xf32>
    %cst_223 = arith.constant 0.000000e+00 : f32
    %583 = vector.broadcast %cst_223 : f32 to vector<2x32xf32>
    %584 = arith.maximumf %582, %583 : vector<2x32xf32>
    %c0_224 = arith.constant 0 : index
    %c0_225 = arith.constant 0 : index
    %585 = vector.load %arg7[%c0_224, %c0_225] : memref<32x2xf32, #tpu.memory_space<vmem>>, vector<32x2xf32>
    %cst_226 = arith.constant dense<0.000000e+00> : vector<2x2xf32>
    %586 = tpu.matmul %584, %585, %cst_226 {dimension_numbers = #tpu.dot_dimension_numbers<[1], [0], [0], [1], [0, 0, 1, 1], [], []>} : vector<2x32xf32>, vector<32x2xf32>, vector<2x2xf32> -> vector<2x2xf32>
    %c0_227 = arith.constant 0 : index
    %c0_228 = arith.constant 0 : index
    %587 = vector.load %arg8[%c0_227, %c0_228] : memref<1x2xf32, #tpu.memory_space<vmem>>, vector<1x2xf32>
    %588 = vector.broadcast %587 : vector<1x2xf32> to vector<2x2xf32>
    %589 = arith.addf %586, %588 : vector<2x2xf32>
    %590 = math.tanh %589 : vector<2x2xf32>
    %cst_229 = arith.constant 1.000000e+00 : f32
    %591 = vector.broadcast %cst_229 : f32 to vector<2x2xf32>
    %592 = arith.mulf %590, %591 : vector<2x2xf32>
    %c0_230 = arith.constant 0 : index
    %c0_231 = arith.constant 0 : index
    %593 = vector.load %arg9[%c0_230, %c0_231] : memref<2x2xf32, #tpu.memory_space<vmem>>, vector<2x2xf32>
    tpu.vector_store %arg9[%c0_230, %c0_231], %592 {strides = array<i32>} : memref<2x2xf32, #tpu.memory_space<vmem>>, vector<2x2xf32>,
    return
  }
}

</mosaic_0001>

<llo_original>
// kernel: tpu_custom_call.1
$region0: #{tpu_custom_call.1}
  #allocation0 [shape = 'u32[]', space=smem, size = 0x4, offset = 0x4, fixed_abs, tag = 'smem constant byte address 0x4 - core index']
  #allocation1 [shape = 'u32[144,128]{1,0:T(1,128)}', space=vmem, size = 0x12000, scoped, tag = 'internal scratch']
  %s0 = inlined_call_operand.vmem [shape: f32[16,128], index: 0, kind: input, shape index: {}]
  %s1 = inlined_call_operand.vmem [shape: f32[128,32], index: 1, kind: input, shape index: {}]
  %s2 = inlined_call_operand.vmem [shape: f32[1,32], index: 2, kind: input, shape index: {}]
  %s3 = inlined_call_operand.vmem [shape: f32[32,32], index: 3, kind: input, shape index: {}]
  %s4 = inlined_call_operand.vmem [shape: f32[1,32], index: 4, kind: input, shape index: {}]
  %s5 = inlined_call_operand.vmem [shape: f32[96,32], index: 5, kind: input, shape index: {}]
  %s6 = inlined_call_operand.vmem [shape: f32[1,32], index: 6, kind: input, shape index: {}]
  %s7 = inlined_call_operand.vmem [shape: f32[32,2], index: 7, kind: input, shape index: {}]
  %s8 = inlined_call_operand.vmem [shape: f32[1,2], index: 8, kind: input, shape index: {}]
  %s9 = inlined_call_operand.hbm [shape: f32[2,2], index: 9, kind: output, shape index: {}]
  %s10 = sld [smem:[#allocation0]]
  $region46: #{tpu_custom_call.1} parent=0
    _
  %s12 = ssub.s32 1, %s10
  %s13 = scalar_select 0, %s12, %s10
  $region1: #{tpu_custom_call.1} parent=0
    #allocation2 [shape = 'u8[1024]{0}', space=vmem, size = 0x400, scoped, tag = 'output window, operand 0, single buffered']
    #allocation3 [shape = 's32[1]{0}', space=sflag, size = 0x4, scoped, tag = 'scoped memory for tpu_custom_call.1']
    %14 = vsyncpa [#allocation3], 0
    // Predicated region
    $region2: #{tpu_custom_call.1} parent=1 // pred_check
      _
    $region3: #{tpu_custom_call.1} parent=1 // pred_check_branch
      %16 = sbr.rel (0) target = $region5
    $region4: #{tpu_custom_call.1} parent=1 // pred_region
      _
    $region5: #{tpu_custom_call.1} parent=1 // pred_fallthru
      _
    // Predicated region
    $region6: #{tpu_custom_call.1} parent=1 // pred_check
      _
    $region7: #{tpu_custom_call.1} parent=1 // pred_check_branch
      %18 = sbr.rel (0) target = $region9
    $region8: #{tpu_custom_call.1} parent=1 // pred_region
      _
    $region9: #{tpu_custom_call.1} parent=1 // pred_fallthru
      _
    // Predicated region
    $region10: #{tpu_custom_call.1} parent=1 // pred_check
      _
    $region11: #{tpu_custom_call.1} parent=1 // pred_check_branch
      %20 = sbr.rel (0) target = $region13
    $region12: #{tpu_custom_call.1} parent=1 // pred_region
      _
    $region13: #{tpu_custom_call.1} parent=1 // pred_fallthru
      _
    // Predicated region
    $region14: #{tpu_custom_call.1} parent=1 // pred_check
      _
    $region15: #{tpu_custom_call.1} parent=1 // pred_check_branch
      %22 = sbr.rel (0) target = $region17
    $region16: #{tpu_custom_call.1} parent=1 // pred_region
      _
    $region17: #{tpu_custom_call.1} parent=1 // pred_fallthru
      _
    // Predicated region
    $region18: #{tpu_custom_call.1} parent=1 // pred_check
      _
    $region19: #{tpu_custom_call.1} parent=1 // pred_check_branch
      %24 = sbr.rel (0) target = $region21
    $region20: #{tpu_custom_call.1} parent=1 // pred_region
      _
    $region21: #{tpu_custom_call.1} parent=1 // pred_fallthru
      _
    // Predicated region
    $region22: #{tpu_custom_call.1} parent=1 // pred_check
      _
    $region23: #{tpu_custom_call.1} parent=1 // pred_check_branch
      %26 = sbr.rel (0) target = $region25
    $region24: #{tpu_custom_call.1} parent=1 // pred_region
      _
    $region25: #{tpu_custom_call.1} parent=1 // pred_fallthru
      _
    // Predicated region
    $region26: #{tpu_custom_call.1} parent=1 // pred_check
      _
    $region27: #{tpu_custom_call.1} parent=1 // pred_check_branch
      %28 = sbr.rel (0) target = $region29
    $region28: #{tpu_custom_call.1} parent=1 // pred_region
      _
    $region29: #{tpu_custom_call.1} parent=1 // pred_fallthru
      _
    // Predicated region
    $region30: #{tpu_custom_call.1} parent=1 // pred_check
      _
    $region31: #{tpu_custom_call.1} parent=1 // pred_check_branch
      %30 = sbr.rel (0) target = $region33
    $region32: #{tpu_custom_call.1} parent=1 // pred_region
      _
    $region33: #{tpu_custom_call.1} parent=1 // pred_fallthru
      _
    // Predicated region
    $region34: #{tpu_custom_call.1} parent=1 // pred_check
      _
    $region35: #{tpu_custom_call.1} parent=1 // pred_check_branch
      %32 = sbr.rel (0) target = $region37
    $region36: #{tpu_custom_call.1} parent=1 // pred_region
      _
    $region37: #{tpu_custom_call.1} parent=1 // pred_fallthru
      _
    %v33 = vld [vmem:[%s0] sm:$0xff]
    %v34 = vrot.slane %v33, 4
    %v35 = vadd.f32 %v33, %v34
    %v36 = vrot.slane %v35, 2
    %v37 = vadd.f32 %v35, %v36
    %v38 = vrot.slane %v37, 1
    %v39 = vadd.f32 %v37, %v38
    %v40 = vrcp.pop 8.0
    %v41 = vmul.f32 %v39, %v40
    %v42 = vsub.f32 %v33, %v41
    %v43 = vmul.f32 %v42, %v42
    %v44 = vrot.slane %v43, 4
    %v45 = vadd.f32 %v43, %v44
    %v46 = vrot.slane %v45, 2
    %v47 = vadd.f32 %v45, %v46
    %v48 = vrot.slane %v47, 1
    %v49 = vadd.f32 %v47, %v48
    %v50 = vrcp.pop 7.0
    %v51 = vmul.f32 %v49, %v50
    %v52 = vrsqrt.pop %v51
    %v53 = vmul.f32 %v51, %v52
    %vm54 = vcmp.eq.f32.partialorder %v51, inf
    %v55 = vsel %vm54, %v51, %v53
    %vm56 = vcmp.eq.f32.partialorder %v51, 0.0
    %v57 = vand.u32 %v51, 2147483648
    %v58 = vsel %vm56, %v57, %v55
    %v59 = vadd.f32 %v58, 1e-10
    %v60 = vrcp.pop %v59
    %v61 = vmul.f32 %v42, %v60
    %v62 = vld [vmem:[%s0 + $0x8] sm:$0xff]
    %v63 = vrot.slane %v62, 4
    %v64 = vadd.f32 %v62, %v63
    %v65 = vrot.slane %v64, 2
    %v66 = vadd.f32 %v64, %v65
    %v67 = vrot.slane %v66, 1
    %v68 = vadd.f32 %v66, %v67
    %v69 = vmul.f32 %v68, %v40
    %v70 = vsub.f32 %v62, %v69
    %v71 = vmul.f32 %v70, %v70
    %v72 = vrot.slane %v71, 4
    %v73 = vadd.f32 %v71, %v72
    %v74 = vrot.slane %v73, 2
    %v75 = vadd.f32 %v73, %v74
    %v76 = vrot.slane %v75, 1
    %v77 = vadd.f32 %v75, %v76
    %v78 = vmul.f32 %v77, %v50
    %v79 = vrsqrt.pop %v78
    %v80 = vmul.f32 %v78, %v79
    %vm81 = vcmp.eq.f32.partialorder %v78, inf
    %v82 = vsel %vm81, %v78, %v80
    %vm83 = vcmp.eq.f32.partialorder %v78, 0.0
    %v84 = vand.u32 %v78, 2147483648
    %v85 = vsel %vm83, %v84, %v82
    %v86 = vadd.f32 %v85, 1e-10
    %v87 = vrcp.pop %v86
    %v88 = vmul.f32 %v70, %v87
    %v89 = vlaneseq
    %v90 = vand.u32 %v89, 127
    %vm91 = vcmp.lt.s32.totalorder %v90, 16
    %v92 = vsel %vm91, %v61, inf
    %v93 = vsel %vm91, %v88, inf
    %v94 = vand.u32 %v90, 1
    %v95 = vshra.s32 %v90, 1
    %v96 = vand.u32 %v95, 1
    %vm97 = vcmp.eq.s32.totalorder %v94, 1
    %vm98 = vcmp.eq.s32.totalorder %v94, %v96
    %99 = vrot.lane.b32.xlu0 %v92, 1
    %v100 = vpop.permute.xlu0 %99
    %101 = vrot.lane.b32.xlu0 %v93, 1
    %v102 = vpop.permute.xlu0 %101
    %103 = vrot.lane.b32.xlu0 %v92, 127
    %v104 = vpop.permute.xlu0 %103
    %105 = vrot.lane.b32.xlu0 %v93, 127
    %v106 = vpop.permute.xlu0 %105
    %v107 = vsel %vm97, %v100, %v104
    %v108 = vsel %vm97, %v102, %v106
    %v109 = vmin.f32 %v92, %v107
    %v110 = vmin.f32 %v93, %v108
    %v111 = vmax.f32 %v92, %v107
    %v112 = vmax.f32 %v93, %v108
    %v113 = vsel %vm98, %v109, %v111
    %v114 = vsel %vm98, %v110, %v112
    %v115 = vshra.s32 %v90, 2
    %v116 = vand.u32 %v115, 1
    %vm117 = vcmp.eq.s32.totalorder %v96, 1
    %vm118 = vcmp.eq.s32.totalorder %v96, %v116
    %119 = vrot.lane.b32.xlu0 %v113, 2
    %v120 = vpop.permute.xlu0 %119
    %121 = vrot.lane.b32.xlu0 %v114, 2
    %v122 = vpop.permute.xlu0 %121
    %123 = vrot.lane.b32.xlu0 %v113, 126
    %v124 = vpop.permute.xlu0 %123
    %125 = vrot.lane.b32.xlu0 %v114, 126
    %v126 = vpop.permute.xlu0 %125
    %v127 = vsel %vm117, %v120, %v124
    %v128 = vsel %vm117, %v122, %v126
    %v129 = vmin.f32 %v113, %v127
    %v130 = vmin.f32 %v114, %v128
    %v131 = vmax.f32 %v113, %v127
    %v132 = vmax.f32 %v114, %v128
    %v133 = vsel %vm118, %v129, %v131
    %v134 = vsel %vm118, %v130, %v132
    %vm135 = vcmp.eq.s32.totalorder %v94, %v116
    %136 = vrot.lane.b32.xlu0 %v133, 1
    %v137 = vpop.permute.xlu0 %136
    %138 = vrot.lane.b32.xlu0 %v134, 1
    %v139 = vpop.permute.xlu0 %138
    %140 = vrot.lane.b32.xlu0 %v133, 127
    %v141 = vpop.permute.xlu0 %140
    %142 = vrot.lane.b32.xlu0 %v134, 127
    %v143 = vpop.permute.xlu0 %142
    %v144 = vsel %vm97, %v137, %v141
    %v145 = vsel %vm97, %v139, %v143
    %v146 = vmin.f32 %v133, %v144
    %v147 = vmin.f32 %v134, %v145
    %v148 = vmax.f32 %v133, %v144
    %v149 = vmax.f32 %v134, %v145
    %v150 = vsel %vm135, %v146, %v148
    %v151 = vsel %vm135, %v147, %v149
    %v152 = vshra.s32 %v90, 3
    %v153 = vand.u32 %v152, 1
    %vm154 = vcmp.eq.s32.totalorder %v116, 1
    %vm155 = vcmp.eq.s32.totalorder %v116, %v153
    %156 = vrot.lane.b32.xlu0 %v150, 4
    %v157 = vpop.permute.xlu0 %156
    %158 = vrot.lane.b32.xlu0 %v151, 4
    %v159 = vpop.permute.xlu0 %158
    %160 = vrot.lane.b32.xlu0 %v150, 124
    %v161 = vpop.permute.xlu0 %160
    %162 = vrot.lane.b32.xlu0 %v151, 124
    %v163 = vpop.permute.xlu0 %162
    %v164 = vsel %vm154, %v157, %v161
    %v165 = vsel %vm154, %v159, %v163
    %v166 = vmin.f32 %v150, %v164
    %v167 = vmin.f32 %v151, %v165
    %v168 = vmax.f32 %v150, %v164
    %v169 = vmax.f32 %v151, %v165
    %v170 = vsel %vm155, %v166, %v168
    %v171 = vsel %vm155, %v167, %v169
    %vm172 = vcmp.eq.s32.totalorder %v96, %v153
    %173 = vrot.lane.b32.xlu0 %v170, 2
    %v174 = vpop.permute.xlu0 %173
    %175 = vrot.lane.b32.xlu0 %v171, 2
    %v176 = vpop.permute.xlu0 %175
    %177 = vrot.lane.b32.xlu0 %v170, 126
    %v178 = vpop.permute.xlu0 %177
    %179 = vrot.lane.b32.xlu0 %v171, 126
    %v180 = vpop.permute.xlu0 %179
    %v181 = vsel %vm117, %v174, %v178
    %v182 = vsel %vm117, %v176, %v180
    %v183 = vmin.f32 %v170, %v181
    %v184 = vmin.f32 %v171, %v182
    %v185 = vmax.f32 %v170, %v181
    %v186 = vmax.f32 %v171, %v182
    %v187 = vsel %vm172, %v183, %v185
    %v188 = vsel %vm172, %v184, %v186
    %vm189 = vcmp.eq.s32.totalorder %v94, %v153
    %190 = vrot.lane.b32.xlu0 %v187, 1
    %v191 = vpop.permute.xlu0 %190
    %192 = vrot.lane.b32.xlu0 %v188, 1
    %v193 = vpop.permute.xlu0 %192
    %194 = vrot.lane.b32.xlu0 %v187, 127
    %v195 = vpop.permute.xlu0 %194
    %196 = vrot.lane.b32.xlu0 %v188, 127
    %v197 = vpop.permute.xlu0 %196
    %v198 = vsel %vm97, %v191, %v195
    %v199 = vsel %vm97, %v193, %v197
    %v200 = vmin.f32 %v187, %v198
    %v201 = vmin.f32 %v188, %v199
    %v202 = vmax.f32 %v187, %v198
    %v203 = vmax.f32 %v188, %v199
    %v204 = vsel %vm189, %v200, %v202
    %v205 = vsel %vm189, %v201, %v203
    %v206 = vshra.s32 %v90, 4
    %v207 = vand.u32 %v206, 1
    %vm208 = vcmp.eq.s32.totalorder %v153, 1
    %vm209 = vcmp.eq.s32.totalorder %v153, %v207
    %210 = vrot.lane.b32.xlu0 %v204, 8
    %v211 = vpop.permute.xlu0 %210
    %212 = vrot.lane.b32.xlu0 %v205, 8
    %v213 = vpop.permute.xlu0 %212
    %214 = vrot.lane.b32.xlu0 %v204, 120
    %v215 = vpop.permute.xlu0 %214
    %216 = vrot.lane.b32.xlu0 %v205, 120
    %v217 = vpop.permute.xlu0 %216
    %v218 = vsel %vm208, %v211, %v215
    %v219 = vsel %vm208, %v213, %v217
    %v220 = vmin.f32 %v204, %v218
    %v221 = vmin.f32 %v205, %v219
    %v222 = vmax.f32 %v204, %v218
    %v223 = vmax.f32 %v205, %v219
    %v224 = vsel %vm209, %v220, %v222
    %v225 = vsel %vm209, %v221, %v223
    %vm226 = vcmp.eq.s32.totalorder %v116, %v207
    %227 = vrot.lane.b32.xlu0 %v224, 4
    %v228 = vpop.permute.xlu0 %227
    %229 = vrot.lane.b32.xlu0 %v225, 4
    %v230 = vpop.permute.xlu0 %229
    %231 = vrot.lane.b32.xlu0 %v224, 124
    %v232 = vpop.permute.xlu0 %231
    %233 = vrot.lane.b32.xlu0 %v225, 124
    %v234 = vpop.permute.xlu0 %233
    %v235 = vsel %vm154, %v228, %v232
    %v236 = vsel %vm154, %v230, %v234
    %v237 = vmin.f32 %v224, %v235
    %v238 = vmin.f32 %v225, %v236
    %v239 = vmax.f32 %v224, %v235
    %v240 = vmax.f32 %v225, %v236
    %v241 = vsel %vm226, %v237, %v239
    %v242 = vsel %vm226, %v238, %v240
    %vm243 = vcmp.eq.s32.totalorder %v96, %v207
    %244 = vrot.lane.b32.xlu0 %v241, 2
    %v245 = vpop.permute.xlu0 %244
    %246 = vrot.lane.b32.xlu0 %v242, 2
    %v247 = vpop.permute.xlu0 %246
    %248 = vrot.lane.b32.xlu0 %v241, 126
    %v249 = vpop.permute.xlu0 %248
    %250 = vrot.lane.b32.xlu0 %v242, 126
    %v251 = vpop.permute.xlu0 %250
    %v252 = vsel %vm117, %v245, %v249
    %v253 = vsel %vm117, %v247, %v251
    %v254 = vmin.f32 %v241, %v252
    %v255 = vmin.f32 %v242, %v253
    %v256 = vmax.f32 %v241, %v252
    %v257 = vmax.f32 %v242, %v253
    %v258 = vsel %vm243, %v254, %v256
    %v259 = vsel %vm243, %v255, %v257
    %vm260 = vcmp.eq.s32.totalorder %v94, %v207
    %261 = vrot.lane.b32.xlu0 %v258, 1
    %v262 = vpop.permute.xlu0 %261
    %263 = vrot.lane.b32.xlu0 %v259, 1
    %v264 = vpop.permute.xlu0 %263
    %265 = vrot.lane.b32.xlu0 %v258, 127
    %v266 = vpop.permute.xlu0 %265
    %267 = vrot.lane.b32.xlu0 %v259, 127
    %v268 = vpop.permute.xlu0 %267
    %v269 = vsel %vm97, %v262, %v266
    %v270 = vsel %vm97, %v264, %v268
    %v271 = vmin.f32 %v258, %v269
    %v272 = vmin.f32 %v259, %v270
    %v273 = vmax.f32 %v258, %v269
    %v274 = vmax.f32 %v259, %v270
    %v275 = vsel %vm260, %v271, %v273
    %v276 = vsel %vm260, %v272, %v274
    %v277 = vshra.s32 %v90, 5
    %v278 = vand.u32 %v277, 1
    %vm279 = vcmp.eq.s32.totalorder %v207, 1
    %vm280 = vcmp.eq.s32.totalorder %v207, %v278
    %281 = vrot.lane.b32.xlu0 %v275, 16
    %v282 = vpop.permute.xlu0 %281
    %283 = vrot.lane.b32.xlu0 %v276, 16
    %v284 = vpop.permute.xlu0 %283
    %285 = vrot.lane.b32.xlu0 %v275, 112
    %v286 = vpop.permute.xlu0 %285
    %287 = vrot.lane.b32.xlu0 %v276, 112
    %v288 = vpop.permute.xlu0 %287
    %v289 = vsel %vm279, %v282, %v286
    %v290 = vsel %vm279, %v284, %v288
    %v291 = vmin.f32 %v275, %v289
    %v292 = vmin.f32 %v276, %v290
    %v293 = vmax.f32 %v275, %v289
    %v294 = vmax.f32 %v276, %v290
    %v295 = vsel %vm280, %v291, %v293
    %v296 = vsel %vm280, %v292, %v294
    %vm297 = vcmp.eq.s32.totalorder %v153, %v278
    %298 = vrot.lane.b32.xlu0 %v295, 8
    %v299 = vpop.permute.xlu0 %298
    %300 = vrot.lane.b32.xlu0 %v296, 8
    %v301 = vpop.permute.xlu0 %300
    %302 = vrot.lane.b32.xlu0 %v295, 120
    %v303 = vpop.permute.xlu0 %302
    %304 = vrot.lane.b32.xlu0 %v296, 120
    %v305 = vpop.permute.xlu0 %304
    %v306 = vsel %vm208, %v299, %v303
    %v307 = vsel %vm208, %v301, %v305
    %v308 = vmin.f32 %v295, %v306
    %v309 = vmin.f32 %v296, %v307
    %v310 = vmax.f32 %v295, %v306
    %v311 = vmax.f32 %v296, %v307
    %v312 = vsel %vm297, %v308, %v310
    %v313 = vsel %vm297, %v309, %v311
    %vm314 = vcmp.eq.s32.totalorder %v116, %v278
    %315 = vrot.lane.b32.xlu0 %v312, 4
    %v316 = vpop.permute.xlu0 %315
    %317 = vrot.lane.b32.xlu0 %v313, 4
    %v318 = vpop.permute.xlu0 %317
    %319 = vrot.lane.b32.xlu0 %v312, 124
    %v320 = vpop.permute.xlu0 %319
    %321 = vrot.lane.b32.xlu0 %v313, 124
    %v322 = vpop.permute.xlu0 %321
    %v323 = vsel %vm154, %v316, %v320
    %v324 = vsel %vm154, %v318, %v322
    %v325 = vmin.f32 %v312, %v323
    %v326 = vmin.f32 %v313, %v324
    %v327 = vmax.f32 %v312, %v323
    %v328 = vmax.f32 %v313, %v324
    %v329 = vsel %vm314, %v325, %v327
    %v330 = vsel %vm314, %v326, %v328
    %vm331 = vcmp.eq.s32.totalorder %v96, %v278
    %332 = vrot.lane.b32.xlu0 %v329, 2
    %v333 = vpop.permute.xlu0 %332
    %334 = vrot.lane.b32.xlu0 %v330, 2
    %v335 = vpop.permute.xlu0 %334
    %336 = vrot.lane.b32.xlu0 %v329, 126
    %v337 = vpop.permute.xlu0 %336
    %338 = vrot.lane.b32.xlu0 %v330, 126
    %v339 = vpop.permute.xlu0 %338
    %v340 = vsel %vm117, %v333, %v337
    %v341 = vsel %vm117, %v335, %v339
    %v342 = vmin.f32 %v329, %v340
    %v343 = vmin.f32 %v330, %v341
    %v344 = vmax.f32 %v329, %v340
    %v345 = vmax.f32 %v330, %v341
    %v346 = vsel %vm331, %v342, %v344
    %v347 = vsel %vm331, %v343, %v345
    %vm348 = vcmp.eq.s32.totalorder %v94, %v278
    %349 = vrot.lane.b32.xlu0 %v346, 1
    %v350 = vpop.permute.xlu0 %349
    %351 = vrot.lane.b32.xlu0 %v347, 1
    %v352 = vpop.permute.xlu0 %351
    %353 = vrot.lane.b32.xlu0 %v346, 127
    %v354 = vpop.permute.xlu0 %353
    %355 = vrot.lane.b32.xlu0 %v347, 127
    %v356 = vpop.permute.xlu0 %355
    %v357 = vsel %vm97, %v350, %v354
    %v358 = vsel %vm97, %v352, %v356
    %v359 = vmin.f32 %v346, %v357
    %v360 = vmin.f32 %v347, %v358
    %v361 = vmax.f32 %v346, %v357
    %v362 = vmax.f32 %v347, %v358
    %v363 = vsel %vm348, %v359, %v361
    %v364 = vsel %vm348, %v360, %v362
    %v365 = vshra.s32 %v90, 6
    %v366 = vand.u32 %v365, 1
    %vm367 = vcmp.eq.s32.totalorder %v278, 1
    %vm368 = vcmp.eq.s32.totalorder %v278, %v366
    %369 = vrot.lane.b32.xlu0 %v363, 32
    %v370 = vpop.permute.xlu0 %369
    %371 = vrot.lane.b32.xlu0 %v364, 32
    %v372 = vpop.permute.xlu0 %371
    %373 = vrot.lane.b32.xlu0 %v363, 96
    %v374 = vpop.permute.xlu0 %373
    %375 = vrot.lane.b32.xlu0 %v364, 96
    %v376 = vpop.permute.xlu0 %375
    %v377 = vsel %vm367, %v370, %v374
    %v378 = vsel %vm367, %v372, %v376
    %v379 = vmin.f32 %v363, %v377
    %v380 = vmin.f32 %v364, %v378
    %v381 = vmax.f32 %v363, %v377
    %v382 = vmax.f32 %v364, %v378
    %v383 = vsel %vm368, %v379, %v381
    %v384 = vsel %vm368, %v380, %v382
    %vm385 = vcmp.eq.s32.totalorder %v207, %v366
    %386 = vrot.lane.b32.xlu0 %v383, 16
    %v387 = vpop.permute.xlu0 %386
    %388 = vrot.lane.b32.xlu0 %v384, 16
    %v389 = vpop.permute.xlu0 %388
    %390 = vrot.lane.b32.xlu0 %v383, 112
    %v391 = vpop.permute.xlu0 %390
    %392 = vrot.lane.b32.xlu0 %v384, 112
    %v393 = vpop.permute.xlu0 %392
    %v394 = vsel %vm279, %v387, %v391
    %v395 = vsel %vm279, %v389, %v393
    %v396 = vmin.f32 %v383, %v394
    %v397 = vmin.f32 %v384, %v395
    %v398 = vmax.f32 %v383, %v394
    %v399 = vmax.f32 %v384, %v395
    %v400 = vsel %vm385, %v396, %v398
    %v401 = vsel %vm385, %v397, %v399
    %vm402 = vcmp.eq.s32.totalorder %v153, %v366
    %403 = vrot.lane.b32.xlu0 %v400, 8
    %v404 = vpop.permute.xlu0 %403
    %405 = vrot.lane.b32.xlu0 %v401, 8
    %v406 = vpop.permute.xlu0 %405
    %407 = vrot.lane.b32.xlu0 %v400, 120
    %v408 = vpop.permute.xlu0 %407
    %409 = vrot.lane.b32.xlu0 %v401, 120
    %v410 = vpop.permute.xlu0 %409
    %v411 = vsel %vm208, %v404, %v408
    %v412 = vsel %vm208, %v406, %v410
    %v413 = vmin.f32 %v400, %v411
    %v414 = vmin.f32 %v401, %v412
    %v415 = vmax.f32 %v400, %v411
    %v416 = vmax.f32 %v401, %v412
    %v417 = vsel %vm402, %v413, %v415
    %v418 = vsel %vm402, %v414, %v416
    %vm419 = vcmp.eq.s32.totalorder %v116, %v366
    %420 = vrot.lane.b32.xlu0 %v417, 4
    %v421 = vpop.permute.xlu0 %420
    %422 = vrot.lane.b32.xlu0 %v418, 4
    %v423 = vpop.permute.xlu0 %422
    %424 = vrot.lane.b32.xlu0 %v417, 124
    %v425 = vpop.permute.xlu0 %424
    %426 = vrot.lane.b32.xlu0 %v418, 124
    %v427 = vpop.permute.xlu0 %426
    %v428 = vsel %vm154, %v421, %v425
    %v429 = vsel %vm154, %v423, %v427
    %v430 = vmin.f32 %v417, %v428
    %v431 = vmin.f32 %v418, %v429
    %v432 = vmax.f32 %v417, %v428
    %v433 = vmax.f32 %v418, %v429
    %v434 = vsel %vm419, %v430, %v432
    %v435 = vsel %vm419, %v431, %v433
    %vm436 = vcmp.eq.s32.totalorder %v96, %v366
    %437 = vrot.lane.b32.xlu0 %v434, 2
    %v438 = vpop.permute.xlu0 %437
    %439 = vrot.lane.b32.xlu0 %v435, 2
    %v440 = vpop.permute.xlu0 %439
    %441 = vrot.lane.b32.xlu0 %v434, 126
    %v442 = vpop.permute.xlu0 %441
    %443 = vrot.lane.b32.xlu0 %v435, 126
    %v444 = vpop.permute.xlu0 %443
    %v445 = vsel %vm117, %v438, %v442
    %v446 = vsel %vm117, %v440, %v444
    %v447 = vmin.f32 %v434, %v445
    %v448 = vmin.f32 %v435, %v446
    %v449 = vmax.f32 %v434, %v445
    %v450 = vmax.f32 %v435, %v446
    %v451 = vsel %vm436, %v447, %v449
    %v452 = vsel %vm436, %v448, %v450
    %vm453 = vcmp.eq.s32.totalorder %v94, %v366
    %454 = vrot.lane.b32.xlu0 %v451, 1
    %v455 = vpop.permute.xlu0 %454
    %456 = vrot.lane.b32.xlu0 %v452, 1
    %v457 = vpop.permute.xlu0 %456
    %458 = vrot.lane.b32.xlu0 %v451, 127
    %v459 = vpop.permute.xlu0 %458
    %460 = vrot.lane.b32.xlu0 %v452, 127
    %v461 = vpop.permute.xlu0 %460
    %v462 = vsel %vm97, %v455, %v459
    %v463 = vsel %vm97, %v457, %v461
    %v464 = vmin.f32 %v451, %v462
    %v465 = vmin.f32 %v452, %v463
    %v466 = vmax.f32 %v451, %v462
    %v467 = vmax.f32 %v452, %v463
    %v468 = vsel %vm453, %v464, %v466
    %v469 = vsel %vm453, %v465, %v467
    %v470 = vshra.s32 %v90, 7
    %v471 = vand.u32 %v470, 1
    %vm472 = vcmp.eq.s32.totalorder %v366, %v471
    %473 = vrot.lane.b32.xlu0 %v468, 64
    %v474 = vpop.permute.xlu0 %473
    %475 = vrot.lane.b32.xlu0 %v469, 64
    %v476 = vpop.permute.xlu0 %475
    %v477 = vmin.f32 %v468, %v474
    %v478 = vmin.f32 %v469, %v476
    %v479 = vmax.f32 %v468, %v474
    %v480 = vmax.f32 %v469, %v476
    %v481 = vsel %vm472, %v477, %v479
    %v482 = vsel %vm472, %v478, %v480
    %vm483 = vcmp.eq.s32.totalorder %v278, %v471
    %484 = vrot.lane.b32.xlu0 %v481, 32
    %v485 = vpop.permute.xlu0 %484
    %486 = vrot.lane.b32.xlu0 %v482, 32
    %v487 = vpop.permute.xlu0 %486
    %488 = vrot.lane.b32.xlu0 %v481, 96
    %v489 = vpop.permute.xlu0 %488
    %490 = vrot.lane.b32.xlu0 %v482, 96
    %v491 = vpop.permute.xlu0 %490
    %v492 = vsel %vm367, %v485, %v489
    %v493 = vsel %vm367, %v487, %v491
    %v494 = vmin.f32 %v481, %v492
    %v495 = vmin.f32 %v482, %v493
    %v496 = vmax.f32 %v481, %v492
    %v497 = vmax.f32 %v482, %v493
    %v498 = vsel %vm483, %v494, %v496
    %v499 = vsel %vm483, %v495, %v497
    %vm500 = vcmp.eq.s32.totalorder %v207, %v471
    %501 = vrot.lane.b32.xlu0 %v498, 16
    %v502 = vpop.permute.xlu0 %501
    %503 = vrot.lane.b32.xlu0 %v499, 16
    %v504 = vpop.permute.xlu0 %503
    %505 = vrot.lane.b32.xlu0 %v498, 112
    %v506 = vpop.permute.xlu0 %505
    %507 = vrot.lane.b32.xlu0 %v499, 112
    %v508 = vpop.permute.xlu0 %507
    %v509 = vsel %vm279, %v502, %v506
    %v510 = vsel %vm279, %v504, %v508
    %v511 = vmin.f32 %v498, %v509
    %v512 = vmin.f32 %v499, %v510
    %v513 = vmax.f32 %v498, %v509
    %v514 = vmax.f32 %v499, %v510
    %v515 = vsel %vm500, %v511, %v513
    %v516 = vsel %vm500, %v512, %v514
    %vm517 = vcmp.eq.s32.totalorder %v153, %v471
    %518 = vrot.lane.b32.xlu0 %v515, 8
    %v519 = vpop.permute.xlu0 %518
    %520 = vrot.lane.b32.xlu0 %v516, 8
    %v521 = vpop.permute.xlu0 %520
    %522 = vrot.lane.b32.xlu0 %v515, 120
    %v523 = vpop.permute.xlu0 %522
    %524 = vrot.lane.b32.xlu0 %v516, 120
    %v525 = vpop.permute.xlu0 %524
    %v526 = vsel %vm208, %v519, %v523
    %v527 = vsel %vm208, %v521, %v525
    %v528 = vmin.f32 %v515, %v526
    %v529 = vmin.f32 %v516, %v527
    %v530 = vmax.f32 %v515, %v526
    %v531 = vmax.f32 %v516, %v527
    %v532 = vsel %vm517, %v528, %v530
    %v533 = vsel %vm517, %v529, %v531
    %vm534 = vcmp.eq.s32.totalorder %v116, %v471
    %535 = vrot.lane.b32.xlu0 %v532, 4
    %v536 = vpop.permute.xlu0 %535
    %537 = vrot.lane.b32.xlu0 %v533, 4
    %v538 = vpop.permute.xlu0 %537
    %539 = vrot.lane.b32.xlu0 %v532, 124
    %v540 = vpop.permute.xlu0 %539
    %541 = vrot.lane.b32.xlu0 %v533, 124
    %v542 = vpop.permute.xlu0 %541
    %v543 = vsel %vm154, %v536, %v540
    %v544 = vsel %vm154, %v538, %v542
    %v545 = vmin.f32 %v532, %v543
    %v546 = vmin.f32 %v533, %v544
    %v547 = vmax.f32 %v532, %v543
    %v548 = vmax.f32 %v533, %v544
    %v549 = vsel %vm534, %v545, %v547
    %v550 = vsel %vm534, %v546, %v548
    %vm551 = vcmp.eq.s32.totalorder %v96, %v471
    %552 = vrot.lane.b32.xlu0 %v549, 2
    %v553 = vpop.permute.xlu0 %552
    %554 = vrot.lane.b32.xlu0 %v550, 2
    %v555 = vpop.permute.xlu0 %554
    %556 = vrot.lane.b32.xlu0 %v549, 126
    %v557 = vpop.permute.xlu0 %556
    %558 = vrot.lane.b32.xlu0 %v550, 126
    %v559 = vpop.permute.xlu0 %558
    %v560 = vsel %vm117, %v553, %v557
    %v561 = vsel %vm117, %v555, %v559
    %v562 = vmin.f32 %v549, %v560
    %v563 = vmin.f32 %v550, %v561
    %v564 = vmax.f32 %v549, %v560
    %v565 = vmax.f32 %v550, %v561
    %v566 = vsel %vm551, %v562, %v564
    %v567 = vsel %vm551, %v563, %v565
    %vm568 = vcmp.eq.s32.totalorder %v94, %v471
    %569 = vrot.lane.b32.xlu0 %v566, 1
    %v570 = vpop.permute.xlu0 %569
    %571 = vrot.lane.b32.xlu0 %v567, 1
    %v572 = vpop.permute.xlu0 %571
    %573 = vrot.lane.b32.xlu0 %v566, 127
    %v574 = vpop.permute.xlu0 %573
    %575 = vrot.lane.b32.xlu0 %v567, 127
    %v576 = vpop.permute.xlu0 %575
    %v577 = vsel %vm97, %v570, %v574
    %v578 = vsel %vm97, %v572, %v576
    %v579 = vmin.f32 %v566, %v577
    %v580 = vmin.f32 %v567, %v578
    %v581 = vmax.f32 %v566, %v577
    %v582 = vmax.f32 %v567, %v578
    %v583 = vsel %vm568, %v579, %v581
    %v584 = vsel %vm568, %v580, %v582
    %v585 = vsel %vm91, %v583, 0.0
    %v586 = vsel %vm91, %v584, 0.0
    %v587 = vld [vmem:[%s1] sm:$0xff]
    %v588 = vld [vmem:[%s1 + $0x8] sm:$0xff]
    %v589 = vld [vmem:[%s1 + $0x10] sm:$0xff]
    %v590 = vld [vmem:[%s1 + $0x18] sm:$0xff]
    %v591 = vld [vmem:[%s1 + $0x20] sm:$0xff]
    %v592 = vld [vmem:[%s1 + $0x28] sm:$0xff]
    %v593 = vld [vmem:[%s1 + $0x30] sm:$0xff]
    %v594 = vld [vmem:[%s1 + $0x38] sm:$0xff]
    %v595 = vld [vmem:[%s1 + $0x40] sm:$0xff]
    %v596 = vld [vmem:[%s1 + $0x48] sm:$0xff]
    %v597 = vld [vmem:[%s1 + $0x50] sm:$0xff]
    %v598 = vld [vmem:[%s1 + $0x58] sm:$0xff]
    %v599 = vld [vmem:[%s1 + $0x60] sm:$0xff]
    %v600 = vld [vmem:[%s1 + $0x68] sm:$0xff]
    %v601 = vld [vmem:[%s1 + $0x70] sm:$0xff]
    %v602 = vld [vmem:[%s1 + $0x78] sm:$0xff]
    %v603 = vld [vmem:[%s2] sm:$0x1]
    %v605 = vlaneseq
    %v606 = vshrl.u32 %v605, 7
    %v607 = vsub.s32 0, %v606
    %v608 = vrot.slane %v603, %v607
    %610 = vmatprep.subr.mxu0 0.0
    %611 = vmatpush1.msra.mxu0 %v602
    %612 = vmatprep.subr.mxu0 0.0
    %613 = vmatpush1.msra.mxu0 %v601
    %614 = vmatprep.subr.mxu0 0.0
    %615 = vmatpush1.msra.mxu0 %v600
    %616 = vmatprep.subr.mxu0 0.0
    %617 = vmatpush1.msra.mxu0 %v599
    %618 = vmatprep.subr.mxu0 0.0
    %619 = vmatpush1.msra.mxu0 %v598
    %620 = vmatprep.subr.mxu0 0.0
    %621 = vmatpush1.msra.mxu0 %v597
    %622 = vmatprep.subr.mxu0 0.0
    %623 = vmatpush1.msra.mxu0 %v596
    %624 = vmatprep.subr.mxu0 0.0
    %625 = vmatpush1.msra.mxu0 %v595
    %626 = vmatprep.subr.mxu0 0.0
    %627 = vmatpush1.msra.mxu0 %v594
    %628 = vmatprep.subr.mxu0 0.0
    %629 = vmatpush1.msra.mxu0 %v593
    %630 = vmatprep.subr.mxu0 0.0
    %631 = vmatpush1.msra.mxu0 %v592
    %632 = vmatprep.subr.mxu0 0.0
    %633 = vmatpush1.msra.mxu0 %v591
    %634 = vmatprep.subr.mxu0 0.0
    %635 = vmatpush1.msra.mxu0 %v590
    %636 = vmatprep.subr.mxu0 0.0
    %637 = vmatpush1.msra.mxu0 %v589
    %638 = vmatprep.subr.mxu0 0.0
    %639 = vmatpush1.msra.mxu0 %v588
    %640 = vmatprep.subr.mxu0 0.0
    %641 = vmatpush1.msra.mxu0 %v587
    %642 = vmatprep.subr.mxu0 0.0
    %643 = vmatpush2.msra.mxu0 0.0
    %644 = vmatprep.subr.mxu0 0.0
    %645 = vmatpush2.msra.mxu0 0.0
    %646 = vmatprep.subr.mxu0 0.0
    %647 = vmatpush2.msra.mxu0 0.0
    %648 = vmatprep.subr.mxu0 0.0
    %649 = vmatpush2.msra.mxu0 0.0
    %650 = vmatprep.subr.mxu0 0.0
    %651 = vmatpush2.msra.mxu0 0.0
    %652 = vmatprep.subr.mxu0 0.0
    %653 = vmatpush2.msra.mxu0 0.0
    %654 = vmatprep.subr.mxu0 0.0
    %655 = vmatpush2.msra.mxu0 0.0
    %656 = vmatprep.subr.mxu0 0.0
    %657 = vmatpush2.msra.mxu0 0.0
    %658 = vmatprep.subr.mxu0 0.0
    %659 = vmatpush2.msra.mxu0 0.0
    %660 = vmatprep.subr.mxu0 0.0
    %661 = vmatpush2.msra.mxu0 0.0
    %662 = vmatprep.subr.mxu0 0.0
    %663 = vmatpush2.msra.mxu0 0.0
    %664 = vmatprep.subr.mxu0 0.0
    %665 = vmatpush2.msra.mxu0 0.0
    %666 = vmatprep.subr.mxu0 0.0
    %667 = vmatpush2.msra.mxu0 0.0
    %668 = vmatprep.subr.mxu0 0.0
    %669 = vmatpush2.msra.mxu0 0.0
    %670 = vmatprep.subr.mxu0 0.0
    %671 = vmatpush2.msra.mxu0 0.0
    %672 = vmatprep.subr.mxu0 0.0
    %673 = vmatpush2.msra.mxu0 0.0
    %674 = vmatprep.mubr.f32.mxu0 0.0
    %675 = vmatmul.mubr.f32.gmra.mxu0 %v585
    %v676 = vpop.f32.mrf.mxu0
    %v677 = vadd.f32 %v608, %v676
    %v678 = vpop.f32.mrf.mxu0
    %679 = vmatprep.mubr.f32.mxu0 0.0
    %680 = vmatmul.mubr.f32.gmra.mxu0 %v586
    %v681 = vpop.f32.mrf.mxu0
    %v682 = vadd.f32 %v608, %v681
    %v683 = vpop.f32.mrf.mxu0
    %684 = vdwg.mxu0
    %v685 = vmax.f32 %v677, 0.0
    %v686 = vmax.f32 %v682, 0.0
    %v687 = vld [vmem:[%s3] sm:$0xff]
    %v688 = vld [vmem:[%s3 + $0x8] sm:$0xff]
    %v689 = vld [vmem:[%s3 + $0x10] sm:$0xff]
    %v690 = vld [vmem:[%s3 + $0x18] sm:$0xff]
    %v691 = vld [vmem:[%s4] sm:$0x1]
    %v693 = vlaneseq
    %v694 = vshrl.u32 %v693, 7
    %v695 = vsub.s32 0, %v694
    %v696 = vrot.slane %v691, %v695
    %vm698 = vcmask 261120
    %v700 = vsel %vm698, %v685, 0
    %v703 = vsel %vm698, %v686, 0
    %705 = vmatprep.subr.mxu0 0.0
    %706 = vmatpush1.msra.mxu0 0.0
    %707 = vmatprep.subr.mxu0 0.0
    %708 = vmatpush1.msra.mxu0 0.0
    %709 = vmatprep.subr.mxu0 0.0
    %710 = vmatpush1.msra.mxu0 0.0
    %711 = vmatprep.subr.mxu0 0.0
    %712 = vmatpush1.msra.mxu0 0.0
    %713 = vmatprep.subr.mxu0 0.0
    %714 = vmatpush1.msra.mxu0 0.0
    %715 = vmatprep.subr.mxu0 0.0
    %716 = vmatpush1.msra.mxu0 0.0
    %717 = vmatprep.subr.mxu0 0.0
    %718 = vmatpush1.msra.mxu0 0.0
    %719 = vmatprep.subr.mxu0 0.0
    %720 = vmatpush1.msra.mxu0 0.0
    %721 = vmatprep.subr.mxu0 0.0
    %722 = vmatpush1.msra.mxu0 0.0
    %723 = vmatprep.subr.mxu0 0.0
    %724 = vmatpush1.msra.mxu0 0.0
    %725 = vmatprep.subr.mxu0 0.0
    %726 = vmatpush1.msra.mxu0 0.0
    %727 = vmatprep.subr.mxu0 0.0
    %728 = vmatpush1.msra.mxu0 0.0
    %729 = vmatprep.subr.mxu0 0.0
    %730 = vmatpush1.msra.mxu0 %v690
    %731 = vmatprep.subr.mxu0 0.0
    %732 = vmatpush1.msra.mxu0 %v689
    %733 = vmatprep.subr.mxu0 0.0
    %734 = vmatpush1.msra.mxu0 %v688
    %735 = vmatprep.subr.mxu0 0.0
    %736 = vmatpush1.msra.mxu0 %v687
    %737 = vmatprep.subr.mxu0 0.0
    %738 = vmatpush2.msra.mxu0 0.0
    %739 = vmatprep.subr.mxu0 0.0
    %740 = vmatpush2.msra.mxu0 0.0
    %741 = vmatprep.subr.mxu0 0.0
    %742 = vmatpush2.msra.mxu0 0.0
    %743 = vmatprep.subr.mxu0 0.0
    %744 = vmatpush2.msra.mxu0 0.0
    %745 = vmatprep.subr.mxu0 0.0
    %746 = vmatpush2.msra.mxu0 0.0
    %747 = vmatprep.subr.mxu0 0.0
    %748 = vmatpush2.msra.mxu0 0.0
    %749 = vmatprep.subr.mxu0 0.0
    %750 = vmatpush2.msra.mxu0 0.0
    %751 = vmatprep.subr.mxu0 0.0
    %752 = vmatpush2.msra.mxu0 0.0
    %753 = vmatprep.subr.mxu0 0.0
    %754 = vmatpush2.msra.mxu0 0.0
    %755 = vmatprep.subr.mxu0 0.0
    %756 = vmatpush2.msra.mxu0 0.0
    %757 = vmatprep.subr.mxu0 0.0
    %758 = vmatpush2.msra.mxu0 0.0
    %759 = vmatprep.subr.mxu0 0.0
    %760 = vmatpush2.msra.mxu0 0.0
    %761 = vmatprep.subr.mxu0 0.0
    %762 = vmatpush2.msra.mxu0 0.0
    %763 = vmatprep.subr.mxu0 0.0
    %764 = vmatpush2.msra.mxu0 0.0
    %765 = vmatprep.subr.mxu0 0.0
    %766 = vmatpush2.msra.mxu0 0.0
    %767 = vmatprep.subr.mxu0 0.0
    %768 = vmatpush2.msra.mxu0 0.0
    %769 = vmatprep.mubr.f32.mxu0 0.0
    %770 = vmatmul.mubr.f32.gmra.mxu0 %v700
    %v771 = vpop.f32.mrf.mxu0
    %v772 = vadd.f32 %v696, %v771
    %v773 = vpop.f32.mrf.mxu0
    %774 = vmatprep.mubr.f32.mxu0 0.0
    %775 = vmatmul.mubr.f32.gmra.mxu0 %v703
    %v776 = vpop.f32.mrf.mxu0
    %v777 = vadd.f32 %v696, %v776
    %v778 = vpop.f32.mrf.mxu0
    %779 = vdwg.mxu0
    %v780 = vsel %vm698, %v772, -inf
    %v781 = vrot.slane %v780, 4
    %v782 = vmax.f32 %v780, %v781
    %v783 = vrot.slane %v782, 2
    %v784 = vmax.f32 %v782, %v783
    %v785 = vrot.slane %v784, 1
    %v786 = vmax.f32 %v784, %v785
    %v787 = vsel %vm698, %v772, inf
    %v788 = vrot.slane %v787, 4
    %v789 = vmin.f32 %v787, %v788
    %v790 = vrot.slane %v789, 2
    %v791 = vmin.f32 %v789, %v790
    %v792 = vrot.slane %v791, 1
    %v793 = vmin.f32 %v791, %v792
    %v794 = vsel %vm698, %v772, 0.0
    %v795 = vrot.slane %v794, 4
    %v796 = vadd.f32 %v794, %v795
    %v797 = vrot.slane %v796, 2
    %v798 = vadd.f32 %v796, %v797
    %v799 = vrot.slane %v798, 1
    %v800 = vadd.f32 %v798, %v799
    %v801 = vmul.f32 %v800, %v40
    %v802 = vsel %vm698, %v777, -inf
    %v803 = vrot.slane %v802, 4
    %v804 = vmax.f32 %v802, %v803
    %v805 = vrot.slane %v804, 2
    %v806 = vmax.f32 %v804, %v805
    %v807 = vrot.slane %v806, 1
    %v808 = vmax.f32 %v806, %v807
    %v809 = vsel %vm698, %v777, inf
    %v810 = vrot.slane %v809, 4
    %v811 = vmin.f32 %v809, %v810
    %v812 = vrot.slane %v811, 2
    %v813 = vmin.f32 %v811, %v812
    %v814 = vrot.slane %v813, 1
    %v815 = vmin.f32 %v813, %v814
    %v816 = vsel %vm698, %v777, 0.0
    %v817 = vrot.slane %v816, 4
    %v818 = vadd.f32 %v816, %v817
    %v819 = vrot.slane %v818, 2
    %v820 = vadd.f32 %v818, %v819
    %v821 = vrot.slane %v820, 1
    %v822 = vadd.f32 %v820, %v821
    %v823 = vmul.f32 %v822, %v40
    %v824 = vlaneseq
    %v825 = vshrl.u32 %v824, 7
    %vm826 = vcmp.eq.s32.totalorder %v825, 1
    %v827 = vsel %vm826, %v808, %v786
    %v828 = vsel %vm826, %v815, %v793
    %v829 = vsel %vm826, %v823, %v801
    %v830 = vld [vmem:[%s5] sm:$0xff]
    %v831 = vld [vmem:[%s5 + $0x8] sm:$0xff]
    %v832 = vld [vmem:[%s5 + $0x10] sm:$0xff]
    %v833 = vld [vmem:[%s5 + $0x18] sm:$0xff]
    %v834 = vld [vmem:[%s5 + $0x20] sm:$0xff]
    %v835 = vld [vmem:[%s5 + $0x28] sm:$0xff]
    %v836 = vld [vmem:[%s5 + $0x30] sm:$0xff]
    %v837 = vld [vmem:[%s5 + $0x38] sm:$0xff]
    %v839 = vsel %vm698, %v828, 0
    %841 = vmatprep.subr.mxu0 0.0
    %842 = vmatpush1.msra.mxu0 0.0
    %843 = vmatprep.subr.mxu0 0.0
    %844 = vmatpush1.msra.mxu0 0.0
    %845 = vmatprep.subr.mxu0 0.0
    %846 = vmatpush1.msra.mxu0 0.0
    %847 = vmatprep.subr.mxu0 0.0
    %848 = vmatpush1.msra.mxu0 0.0
    %849 = vmatprep.subr.mxu0 0.0
    %850 = vmatpush1.msra.mxu0 0.0
    %851 = vmatprep.subr.mxu0 0.0
    %852 = vmatpush1.msra.mxu0 0.0
    %853 = vmatprep.subr.mxu0 0.0
    %854 = vmatpush1.msra.mxu0 0.0
    %855 = vmatprep.subr.mxu0 0.0
    %856 = vmatpush1.msra.mxu0 0.0
    %857 = vmatprep.subr.mxu0 0.0
    %858 = vmatpush1.msra.mxu0 0.0
    %859 = vmatprep.subr.mxu0 0.0
    %860 = vmatpush1.msra.mxu0 0.0
    %861 = vmatprep.subr.mxu0 0.0
    %862 = vmatpush1.msra.mxu0 0.0
    %863 = vmatprep.subr.mxu0 0.0
    %864 = vmatpush1.msra.mxu0 0.0
    %865 = vmatprep.subr.mxu0 0.0
    %866 = vmatpush1.msra.mxu0 %v837
    %867 = vmatprep.subr.mxu0 0.0
    %868 = vmatpush1.msra.mxu0 %v836
    %869 = vmatprep.subr.mxu0 0.0
    %870 = vmatpush1.msra.mxu0 %v835
    %871 = vmatprep.subr.mxu0 0.0
    %872 = vmatpush1.msra.mxu0 %v834
    %873 = vmatprep.subr.mxu0 0.0
    %874 = vmatpush2.msra.mxu0 0.0
    %875 = vmatprep.subr.mxu0 0.0
    %876 = vmatpush2.msra.mxu0 0.0
    %877 = vmatprep.subr.mxu0 0.0
    %878 = vmatpush2.msra.mxu0 0.0
    %879 = vmatprep.subr.mxu0 0.0
    %880 = vmatpush2.msra.mxu0 0.0
    %881 = vmatprep.subr.mxu0 0.0
    %882 = vmatpush2.msra.mxu0 0.0
    %883 = vmatprep.subr.mxu0 0.0
    %884 = vmatpush2.msra.mxu0 0.0
    %885 = vmatprep.subr.mxu0 0.0
    %886 = vmatpush2.msra.mxu0 0.0
    %887 = vmatprep.subr.mxu0 0.0
    %888 = vmatpush2.msra.mxu0 0.0
    %889 = vmatprep.subr.mxu0 0.0
    %890 = vmatpush2.msra.mxu0 0.0
    %891 = vmatprep.subr.mxu0 0.0
    %892 = vmatpush2.msra.mxu0 0.0
    %893 = vmatprep.subr.mxu0 0.0
    %894 = vmatpush2.msra.mxu0 0.0
    %895 = vmatprep.subr.mxu0 0.0
    %896 = vmatpush2.msra.mxu0 0.0
    %897 = vmatprep.subr.mxu0 0.0
    %898 = vmatpush2.msra.mxu0 0.0
    %899 = vmatprep.subr.mxu0 0.0
    %900 = vmatpush2.msra.mxu0 0.0
    %901 = vmatprep.subr.mxu0 0.0
    %902 = vmatpush2.msra.mxu0 0.0
    %903 = vmatprep.subr.mxu0 0.0
    %904 = vmatpush2.msra.mxu0 0.0
    %905 = vmatprep.mubr.f32.mxu0 0.0
    %906 = vmatmul.mubr.f32.gmra.mxu0 %v839
    %v907 = vpop.f32.mrf.mxu0
    %v908 = vadd.f32 0.0, %v907
    %v909 = vpop.f32.mrf.mxu0
    %910 = vdwg.mxu0
    %v912 = vsel %vm698, %v827, 0
    %914 = vmatprep.subr.mxu0 0.0
    %915 = vmatpush1.msra.mxu0 0.0
    %916 = vmatprep.subr.mxu0 0.0
    %917 = vmatpush1.msra.mxu0 0.0
    %918 = vmatprep.subr.mxu0 0.0
    %919 = vmatpush1.msra.mxu0 0.0
    %920 = vmatprep.subr.mxu0 0.0
    %921 = vmatpush1.msra.mxu0 0.0
    %922 = vmatprep.subr.mxu0 0.0
    %923 = vmatpush1.msra.mxu0 0.0
    %924 = vmatprep.subr.mxu0 0.0
    %925 = vmatpush1.msra.mxu0 0.0
    %926 = vmatprep.subr.mxu0 0.0
    %927 = vmatpush1.msra.mxu0 0.0
    %928 = vmatprep.subr.mxu0 0.0
    %929 = vmatpush1.msra.mxu0 0.0
    %930 = vmatprep.subr.mxu0 0.0
    %931 = vmatpush1.msra.mxu0 0.0
    %932 = vmatprep.subr.mxu0 0.0
    %933 = vmatpush1.msra.mxu0 0.0
    %934 = vmatprep.subr.mxu0 0.0
    %935 = vmatpush1.msra.mxu0 0.0
    %936 = vmatprep.subr.mxu0 0.0
    %937 = vmatpush1.msra.mxu0 0.0
    %938 = vmatprep.subr.mxu0 0.0
    %939 = vmatpush1.msra.mxu0 %v833
    %940 = vmatprep.subr.mxu0 0.0
    %941 = vmatpush1.msra.mxu0 %v832
    %942 = vmatprep.subr.mxu0 0.0
    %943 = vmatpush1.msra.mxu0 %v831
    %944 = vmatprep.subr.mxu0 0.0
    %945 = vmatpush1.msra.mxu0 %v830
    %946 = vmatprep.subr.mxu0 0.0
    %947 = vmatpush2.msra.mxu0 0.0
    %948 = vmatprep.subr.mxu0 0.0
    %949 = vmatpush2.msra.mxu0 0.0
    %950 = vmatprep.subr.mxu0 0.0
    %951 = vmatpush2.msra.mxu0 0.0
    %952 = vmatprep.subr.mxu0 0.0
    %953 = vmatpush2.msra.mxu0 0.0
    %954 = vmatprep.subr.mxu0 0.0
    %955 = vmatpush2.msra.mxu0 0.0
    %956 = vmatprep.subr.mxu0 0.0
    %957 = vmatpush2.msra.mxu0 0.0
    %958 = vmatprep.subr.mxu0 0.0
    %959 = vmatpush2.msra.mxu0 0.0
    %960 = vmatprep.subr.mxu0 0.0
    %961 = vmatpush2.msra.mxu0 0.0
    %962 = vmatprep.subr.mxu0 0.0
    %963 = vmatpush2.msra.mxu0 0.0
    %964 = vmatprep.subr.mxu0 0.0
    %965 = vmatpush2.msra.mxu0 0.0
    %966 = vmatprep.subr.mxu0 0.0
    %967 = vmatpush2.msra.mxu0 0.0
    %968 = vmatprep.subr.mxu0 0.0
    %969 = vmatpush2.msra.mxu0 0.0
    %970 = vmatprep.subr.mxu0 0.0
    %971 = vmatpush2.msra.mxu0 0.0
    %972 = vmatprep.subr.mxu0 0.0
    %973 = vmatpush2.msra.mxu0 0.0
    %974 = vmatprep.subr.mxu0 0.0
    %975 = vmatpush2.msra.mxu0 0.0
    %976 = vmatprep.subr.mxu0 0.0
    %977 = vmatpush2.msra.mxu0 0.0
    %978 = vmatprep.mubr.f32.mxu0 0.0
    %979 = vmatmul.mubr.f32.gmra.mxu0 %v912
    %v980 = vpop.f32.mrf.mxu0
    %v981 = vadd.f32 %v908, %v980
    %v982 = vpop.f32.mrf.mxu0
    %983 = vdwg.mxu0
    %v984 = vld [vmem:[%s5 + $0x40] sm:$0xff]
    %v985 = vld [vmem:[%s5 + $0x48] sm:$0xff]
    %v986 = vld [vmem:[%s5 + $0x50] sm:$0xff]
    %v987 = vld [vmem:[%s5 + $0x58] sm:$0xff]
    %v989 = vsel %vm698, %v829, 0
    %991 = vmatprep.subr.mxu0 0.0
    %992 = vmatpush1.msra.mxu0 0.0
    %993 = vmatprep.subr.mxu0 0.0
    %994 = vmatpush1.msra.mxu0 0.0
    %995 = vmatprep.subr.mxu0 0.0
    %996 = vmatpush1.msra.mxu0 0.0
    %997 = vmatprep.subr.mxu0 0.0
    %998 = vmatpush1.msra.mxu0 0.0
    %999 = vmatprep.subr.mxu0 0.0
    %1000 = vmatpush1.msra.mxu0 0.0
    %1001 = vmatprep.subr.mxu0 0.0
    %1002 = vmatpush1.msra.mxu0 0.0
    %1003 = vmatprep.subr.mxu0 0.0
    %1004 = vmatpush1.msra.mxu0 0.0
    %1005 = vmatprep.subr.mxu0 0.0
    %1006 = vmatpush1.msra.mxu0 0.0
    %1007 = vmatprep.subr.mxu0 0.0
    %1008 = vmatpush1.msra.mxu0 0.0
    %1009 = vmatprep.subr.mxu0 0.0
    %1010 = vmatpush1.msra.mxu0 0.0
    %1011 = vmatprep.subr.mxu0 0.0
    %1012 = vmatpush1.msra.mxu0 0.0
    %1013 = vmatprep.subr.mxu0 0.0
    %1014 = vmatpush1.msra.mxu0 0.0
    %1015 = vmatprep.subr.mxu0 0.0
    %1016 = vmatpush1.msra.mxu0 %v987
    %1017 = vmatprep.subr.mxu0 0.0
    %1018 = vmatpush1.msra.mxu0 %v986
    %1019 = vmatprep.subr.mxu0 0.0
    %1020 = vmatpush1.msra.mxu0 %v985
    %1021 = vmatprep.subr.mxu0 0.0
    %1022 = vmatpush1.msra.mxu0 %v984
    %1023 = vmatprep.subr.mxu0 0.0
    %1024 = vmatpush2.msra.mxu0 0.0
    %1025 = vmatprep.subr.mxu0 0.0
    %1026 = vmatpush2.msra.mxu0 0.0
    %1027 = vmatprep.subr.mxu0 0.0
    %1028 = vmatpush2.msra.mxu0 0.0
    %1029 = vmatprep.subr.mxu0 0.0
    %1030 = vmatpush2.msra.mxu0 0.0
    %1031 = vmatprep.subr.mxu0 0.0
    %1032 = vmatpush2.msra.mxu0 0.0
    %1033 = vmatprep.subr.mxu0 0.0
    %1034 = vmatpush2.msra.mxu0 0.0
    %1035 = vmatprep.subr.mxu0 0.0
    %1036 = vmatpush2.msra.mxu0 0.0
    %1037 = vmatprep.subr.mxu0 0.0
    %1038 = vmatpush2.msra.mxu0 0.0
    %1039 = vmatprep.subr.mxu0 0.0
    %1040 = vmatpush2.msra.mxu0 0.0
    %1041 = vmatprep.subr.mxu0 0.0
    %1042 = vmatpush2.msra.mxu0 0.0
    %1043 = vmatprep.subr.mxu0 0.0
    %1044 = vmatpush2.msra.mxu0 0.0
    %1045 = vmatprep.subr.mxu0 0.0
    %1046 = vmatpush2.msra.mxu0 0.0
    %1047 = vmatprep.subr.mxu0 0.0
    %1048 = vmatpush2.msra.mxu0 0.0
    %1049 = vmatprep.subr.mxu0 0.0
    %1050 = vmatpush2.msra.mxu0 0.0
    %1051 = vmatprep.subr.mxu0 0.0
    %1052 = vmatpush2.msra.mxu0 0.0
    %1053 = vmatprep.subr.mxu0 0.0
    %1054 = vmatpush2.msra.mxu0 0.0
    %1055 = vmatprep.mubr.f32.mxu0 0.0
    %1056 = vmatmul.mubr.f32.gmra.mxu0 %v989
    %v1057 = vpop.f32.mrf.mxu0
    %v1058 = vadd.f32 0.0, %v1057
    %v1059 = vpop.f32.mrf.mxu0
    %1060 = vdwg.mxu0
    %v1061 = vadd.f32 %v981, %v1058
    %v1062 = vld [vmem:[%s6] sm:$0x1]
    %v1064 = vlaneseq
    %v1065 = vshrl.u32 %v1064, 7
    %v1066 = vsub.s32 0, %v1065
    %v1067 = vrot.slane %v1062, %v1066
    %v1069 = vadd.f32 %v1061, %v1067
    %v1070 = vmax.f32 %v1069, 0.0
    %v1071 = vld [vmem:[%s7] sm:$0xff]
    %v1072 = vld [vmem:[%s7 + $0x8] sm:$0xff]
    %v1073 = vld [vmem:[%s7 + $0x10] sm:$0xff]
    %v1074 = vld [vmem:[%s7 + $0x18] sm:$0xff]
    %v1075 = vld [vmem:[%s8] sm:$0x1]
    %v1077 = vlaneseq
    %v1078 = vshrl.u32 %v1077, 7
    %v1079 = vsub.s32 0, %v1078
    %v1080 = vrot.slane %v1075, %v1079
    %v1083 = vsel %vm698, %v1070, 0
    %1085 = vmatprep.subr.mxu0 0.0
    %1086 = vmatpush1.msra.mxu0 0.0
    %1087 = vmatprep.subr.mxu0 0.0
    %1088 = vmatpush1.msra.mxu0 0.0
    %1089 = vmatprep.subr.mxu0 0.0
    %1090 = vmatpush1.msra.mxu0 0.0
    %1091 = vmatprep.subr.mxu0 0.0
    %1092 = vmatpush1.msra.mxu0 0.0
    %1093 = vmatprep.subr.mxu0 0.0
    %1094 = vmatpush1.msra.mxu0 0.0
    %1095 = vmatprep.subr.mxu0 0.0
    %1096 = vmatpush1.msra.mxu0 0.0
    %1097 = vmatprep.subr.mxu0 0.0
    %1098 = vmatpush1.msra.mxu0 0.0
    %1099 = vmatprep.subr.mxu0 0.0
    %1100 = vmatpush1.msra.mxu0 0.0
    %1101 = vmatprep.subr.mxu0 0.0
    %1102 = vmatpush1.msra.mxu0 0.0
    %1103 = vmatprep.subr.mxu0 0.0
    %1104 = vmatpush1.msra.mxu0 0.0
    %1105 = vmatprep.subr.mxu0 0.0
    %1106 = vmatpush1.msra.mxu0 0.0
    %1107 = vmatprep.subr.mxu0 0.0
    %1108 = vmatpush1.msra.mxu0 0.0
    %1109 = vmatprep.subr.mxu0 0.0
    %1110 = vmatpush1.msra.mxu0 %v1074
    %1111 = vmatprep.subr.mxu0 0.0
    %1112 = vmatpush1.msra.mxu0 %v1073
    %1113 = vmatprep.subr.mxu0 0.0
    %1114 = vmatpush1.msra.mxu0 %v1072
    %1115 = vmatprep.subr.mxu0 0.0
    %1116 = vmatpush1.msra.mxu0 %v1071
    %1117 = vmatprep.subr.mxu0 0.0
    %1118 = vmatpush2.msra.mxu0 0.0
    %1119 = vmatprep.subr.mxu0 0.0
    %1120 = vmatpush2.msra.mxu0 0.0
    %1121 = vmatprep.subr.mxu0 0.0
    %1122 = vmatpush2.msra.mxu0 0.0
    %1123 = vmatprep.subr.mxu0 0.0
    %1124 = vmatpush2.msra.mxu0 0.0
    %1125 = vmatprep.subr.mxu0 0.0
    %1126 = vmatpush2.msra.mxu0 0.0
    %1127 = vmatprep.subr.mxu0 0.0
    %1128 = vmatpush2.msra.mxu0 0.0
    %1129 = vmatprep.subr.mxu0 0.0
    %1130 = vmatpush2.msra.mxu0 0.0
    %1131 = vmatprep.subr.mxu0 0.0
    %1132 = vmatpush2.msra.mxu0 0.0
    %1133 = vmatprep.subr.mxu0 0.0
    %1134 = vmatpush2.msra.mxu0 0.0
    %1135 = vmatprep.subr.mxu0 0.0
    %1136 = vmatpush2.msra.mxu0 0.0
    %1137 = vmatprep.subr.mxu0 0.0
    %1138 = vmatpush2.msra.mxu0 0.0
    %1139 = vmatprep.subr.mxu0 0.0
    %1140 = vmatpush2.msra.mxu0 0.0
    %1141 = vmatprep.subr.mxu0 0.0
    %1142 = vmatpush2.msra.mxu0 0.0
    %1143 = vmatprep.subr.mxu0 0.0
    %1144 = vmatpush2.msra.mxu0 0.0
    %1145 = vmatprep.subr.mxu0 0.0
    %1146 = vmatpush2.msra.mxu0 0.0
    %1147 = vmatprep.subr.mxu0 0.0
    %1148 = vmatpush2.msra.mxu0 0.0
    %1149 = vmatprep.mubr.f32.mxu0 0.0
    %1150 = vmatmul.mubr.f32.gmra.mxu0 %v1083
    %v1151 = vpop.f32.mrf.mxu0
    %v1152 = vadd.f32 %v1080, %v1151
    %v1153 = vpop.f32.mrf.mxu0
    %1154 = vdwg.mxu0
    %v1155 = vtanh.pop %v1152
    %vm1156 = vcmask 9216
    %1157 = vst.msk [vmem:[#allocation2] sm:$0x3] %vm1156, %v1155
    // Predicated region
    $region38: #{tpu_custom_call.1} parent=1 // pred_check
      _
    $region39: #{tpu_custom_call.1} parent=1 // pred_check_branch
      %1159 = sbr.rel (0) target = $region41
    $region40: #{tpu_custom_call.1} parent=1 // pred_region
      %s1161 = ssub.s32 32, 32
      %1162 = vsyncadd [#allocation3], %s1161
      %s1164 = sshll.u32 [#allocation2], 4
      %s1165 = int_to_ptr.vmem [resolvable:$true] %s1164
      %1167 = dma.vmem_to_hbm [thread:$0]  %s1165, 32, %s9, [#allocation3]
    $region41: #{tpu_custom_call.1} parent=1 // pred_fallthru
      _
    // Predicated region
    $region42: #{tpu_custom_call.1} parent=1 // pred_check
      _
    $region43: #{tpu_custom_call.1} parent=1 // pred_check_branch
      %1169 = sbr.rel (0) target = $region45
    $region44: #{tpu_custom_call.1} parent=1 // pred_region
      %1170 = dma.done [#allocation3], 32
    $region45: #{tpu_custom_call.1} parent=1 // pred_fallthru
      _
    %1171 = vsyncpa [#allocation3], 1

</llo_original>
